<compile_context>
chip_gen: v6e
topology: v6e:2x2x1
jax: 0.10.0
libtpu: 0.0.40
codegen_flags: <defaults>
</compile_context>

<pallas_src>
import functools

import numpy as np
import jax
import jax.numpy as jnp
from jax import lax
from jax.experimental import pallas as pl
from jax.experimental.pallas import tpu as pltpu

NEG_SLOPE = 0.2   # LeakyReLU negative slope
T_SOFTMAX = 30.0  # AAB temperature


def _lrelu(v):
    return jnp.where(v >= 0, v, NEG_SLOPE * v)


# --------------------------------- kernel -----------------------------------
def aab_kernel(x_ref, m_first_ref, m_last_ref, wcat_ref, wk4_ref, m_k2_ref,
               b_k2_ref, pool_adm1_ref, adm2_ref, out_ref, pad_ref,
               *, Nb, H, WC):
    x3 = x_ref[...]                                        # (Nb, H, WC) f32
    x2d = x3.reshape(Nb * H, WC)

    # conv_first (1x1, no bias) + LeakyReLU -- block-diagonal matmul with a
    # fat M = Nb*H row dimension.
    x1 = _lrelu(jnp.dot(x2d, m_first_ref[...],
                        preferred_element_type=jnp.float32))        # (Nb*H, WC)
    x1_3 = x1.reshape(Nb, H, WC)

    # Per-image H-padded scratch (the W padding is folded into the banded conv
    # weights): only the two border rows need zeroing, and that must happen
    # every step (parallel grid sharding -> per-core scratch streams).
    zrow = jnp.zeros((Nb, 1, WC), jnp.float32)
    pad_ref[:, 0:1, :] = zrow
    pad_ref[:, H + 1:H + 2, :] = zrow
    pad_ref[:, 1:H + 1, :] = x1_3

    # k1 | k3 | non_attention in ONE matmul with K = 3*WC: lane-concat the
    # up / center / down row taps (center straight from registers) and hit the
    # merged banded weight matrix.
    lhs = jnp.concatenate(
        [pad_ref[:, 0:H, :], x1_3, pad_ref[:, 2:H + 2, :]],
        axis=2).reshape(Nb * H, 3 * WC)
    cat = jnp.dot(lhs, wcat_ref[...],
                  preferred_element_type=jnp.float32)               # (Nb*H, 3WC)
    k1o = cat[:, 0:WC]
    k3o = cat[:, WC:2 * WC]
    nao = cat[:, 2 * WC:3 * WC]

    # attention branch: lrelu -> k2 (1x1 + bias) -> sigmoid, gate k3 output.
    y = _lrelu(k1o)
    y = jnp.dot(y, m_k2_ref[...],
                preferred_element_type=jnp.float32) + b_k2_ref[...]
    att_in = k3o * jax.nn.sigmoid(y)                                # (Nb*H, WC)
    att_in3 = att_in.reshape(Nb, H, WC)

    # k4 (3x3) on the gated activation: reuse the padded scratch for the
    # shifted taps (border rows are still zero), single K = 3*WC matmul.
    pad_ref[:, 1:H + 1, :] = att_in3
    lhs4 = jnp.concatenate(
        [pad_ref[:, 0:H, :], att_in3, pad_ref[:, 2:H + 2, :]],
        axis=2).reshape(Nb * H, 3 * WC)
    attention = jnp.dot(lhs4, wk4_ref[...],
                        preferred_element_type=jnp.float32)         # (Nb*H, WC)

    # ADM gate (per image): avg-pool + first Linear folded host-side into one
    # (WC, nf/reduction) matrix; then ReLU -> Linear -> softmax(y / t).
    s = jnp.sum(x1_3, axis=1)                                       # (Nb, WC)
    hvec = jnp.maximum(
        jnp.dot(s, pool_adm1_ref[...], preferred_element_type=jnp.float32),
        0.0)                                                        # (Nb, nf/r)
    logits = jnp.dot(hvec, adm2_ref[...],
                     preferred_element_type=jnp.float32) / T_SOFTMAX
    logits = logits - jnp.max(logits, axis=1, keepdims=True)
    e = jnp.exp(logits)
    ax = e / jnp.sum(e, axis=1, keepdims=True)                      # (Nb, K=2)

    # per-image gated mix + lrelu + conv_last (1x1) + residual.
    g0 = ax[:, 0:1].reshape(Nb, 1, 1)
    g1 = ax[:, 1:2].reshape(Nb, 1, 1)
    mixed = _lrelu(attention.reshape(Nb, H, WC) * g0
                   + nao.reshape(Nb, H, WC) * g1)
    out = jnp.dot(mixed.reshape(Nb * H, WC), m_last_ref[...],
                  preferred_element_type=jnp.float32)
    out_ref[...] = (out + x2d).reshape(Nb, H, WC).astype(out_ref.dtype)


# --------------------------------- wrapper ----------------------------------
def aab_forward(x_nchw, kp, images_per_step=None):
    """x_nchw: (N, C, H, W) float32; kp: dict of kernel-layout params."""
    N, C, H, W = x_nchw.shape
    WC = W * C
    if images_per_step is None:
        # Fatten MXU M (= Nb*H rows) while keeping >= 2 grid steps so the
        # "parallel" batch axis still feeds both TensorCores on v7x; on
        # v5e/v6e the extra step only costs ~0.35 us of pipeline overhead.
        images_per_step = max(1, N // 2)
    Nb = images_per_step
    assert N % Nb == 0, "batch must divide images_per_step"
    steps = N // Nb

    # channel-interleaved, lane-dense layout: (N, H, W*C)
    # TODO(synk): for large configs keep activations NHWC end-to-end to avoid
    # this HBM-side layout round-trip before/after the kernel.
    x2d = jnp.transpose(x_nchw, (0, 2, 3, 1)).reshape(N, H, WC)

    kern = functools.partial(aab_kernel, Nb=Nb, H=H, WC=WC)
    full = lambda a: pl.BlockSpec(a.shape, lambda n, _nd=a.ndim: (0,) * _nd)

    out2d = pl.pallas_call(
        kern,
        out_shape=jax.ShapeDtypeStruct((N, H, WC), jnp.float32),
        grid_spec=pltpu.PrefetchScalarGridSpec(
            num_scalar_prefetch=0,
            grid=(steps,),
            in_specs=[
                pl.BlockSpec((Nb, H, WC), lambda n: (n, 0, 0)),   # x
                full(kp["m_first"]),
                full(kp["m_last"]),
                full(kp["w_cat"]),
                full(kp["w_k4"]),
                full(kp["m_k2"]),
                full(kp["b_k2"]),
                full(kp["pool_adm1"]),
                full(kp["adm2"]),
            ],
            out_specs=pl.BlockSpec((Nb, H, WC), lambda n: (n, 0, 0)),
            scratch_shapes=[pltpu.VMEM((Nb, H + 2, WC), jnp.float32)],
        ),
        compiler_params=pltpu.CompilerParams(
            dimension_semantics=("parallel",),     # batch elems independent
            vmem_limit_bytes=32 * 1024 * 1024),
    )(x2d, kp["m_first"], kp["m_last"], kp["w_cat"], kp["w_k4"],
      kp["m_k2"], kp["b_k2"], kp["pool_adm1"], kp["adm2"])

    out_nhwc = out2d.reshape(N, H, W, C)
    return jnp.transpose(out_nhwc, (0, 3, 1, 2))


# ------------------------- pure-JAX reference (NCHW) -------------------------
def _conv_nchw(x, w, padding, bias=None):
    out = lax.conv_general_dilated(
        x, w, window_strides=(1, 1),
        padding=[(padding, padding), (padding, padding)],
        dimension_numbers=("NCHW", "OIHW", "NCHW"))
    if bias is not None:
        out = out + bias.reshape(1, -1, 1, 1)
    return out


def aab_reference(x, pt):
    residual = x
    a = x.shape[0]
    x1 = _lrelu(_conv_nchw(x, pt["w_first"], 0))
    y = jnp.mean(x1, axis=(2, 3))                       # (a, nf)
    y = jnp.maximum(y @ pt["w_adm1"].T, 0.0)
    y = y @ pt["w_adm2"].T
    ax = jax.nn.softmax(y / T_SOFTMAX, axis=1)
    t1 = _lrelu(_conv_nchw(x1, pt["w_k1"], 1))
    t1 = jax.nn.sigmoid(_conv_nchw(t1, pt["w_k2"], 0, pt["b_k2"]))
    attention = _conv_nchw(_conv_nchw(x1, pt["w_k3"], 1) * t1, pt["w_k4"], 1)
    non_attention = _conv_nchw(x1, pt["w_na"], 1)
    z = _lrelu(attention * ax[:, 0].reshape(a, 1, 1, 1)
               + non_attention * ax[:, 1].reshape(a, 1, 1, 1))
    return _conv_nchw(z, pt["w_last"], 0) + residual


# ------------------------------- parameters ---------------------------------
def make_pt_params(key, nf, reduction=4, K=2):
    ks = jax.random.split(key, 11)
    rnd = lambda k, shp: (jax.random.normal(k, shp, jnp.float32) * 0.1)
    # PyTorch-layout params (OIHW / (out,in) / (out,))
    return {
        "w_first": rnd(ks[0], (nf, nf, 1, 1)),
        "w_last":  rnd(ks[1], (nf, nf, 1, 1)),
        "w_adm1":  rnd(ks[2], (nf // reduction, nf)),
        "w_adm2":  rnd(ks[3], (K, nf // reduction)),
        "w_k1":    rnd(ks[4], (nf, nf, 3, 3)),
        "w_k2":    rnd(ks[5], (nf, nf, 1, 1)),
        "b_k2":    rnd(ks[6], (nf,)),
        "w_k3":    rnd(ks[7], (nf, nf, 3, 3)),
        "w_k4":    rnd(ks[8], (nf, nf, 3, 3)),
        "w_na":    rnd(ks[9], (nf, nf, 3, 3)),
    }


def make_kernel_params(pt, H, W):
    """Fold all conv weights into lane-dense matmul matrices (host-side)."""
    nf = pt["w_first"].shape[0]
    WC = W * nf
    eye_w = np.eye(W, dtype=np.float32)

    def to_blockdiag(w_oi11):   # 1x1 conv -> (WC, WC) block-diagonal
        w_io = np.asarray(w_oi11[:, :, 0, 0]).T          # (in, out)
        return jnp.asarray(np.kron(eye_w, w_io))

    def banded(w_oihw, di):     # 3x3 conv, row tap di -> (WC, WC) banded
        Kn = np.asarray(w_oihw)
        B = np.zeros((WC, WC), np.float32)
        for w_ in range(W):
            for dj in range(3):
                u = w_ + dj - 1          # input column (zero-pad cols omitted)
                if 0 <= u < W:
                    B[u * nf:(u + 1) * nf, w_ * nf:(w_ + 1) * nf] = \
                        Kn[:, :, di, dj].T
        return B

    # Merged K = 3*WC weights: row block di holds the tap-di banded matrices.
    w_cat = np.concatenate(
        [np.concatenate([banded(pt["w_k1"], di),
                         banded(pt["w_k3"], di),
                         banded(pt["w_na"], di)], axis=1)
         for di in range(3)], axis=0)                    # (3*WC, 3*WC)
    w_k4 = np.concatenate([banded(pt["w_k4"], di) for di in range(3)],
                          axis=0)                        # (3*WC, WC)

    # avg-pool (channel de-interleave + 1/(H*W)) folded with the first ADM
    # Linear (legal: ReLU comes after it).
    pool = np.kron(np.ones((W, 1), np.float32),
                   np.eye(nf, dtype=np.float32)) / float(H * W)   # (WC, nf)
    pool_adm1 = pool @ np.asarray(pt["w_adm1"]).T        # (WC, nf//reduction)

    return {
        "m_first":   to_blockdiag(pt["w_first"]),
        "m_last":    to_blockdiag(pt["w_last"]),
        "m_k2":      to_blockdiag(pt["w_k2"]),
        "b_k2":      jnp.asarray(np.tile(np.asarray(pt["b_k2"]), W)
                                 .reshape(1, WC)),
        "w_cat":     jnp.asarray(w_cat),
        "w_k4":      jnp.asarray(w_k4),
        "pool_adm1": jnp.asarray(pool_adm1),
        "adm2":      pt["w_adm2"].T,
    }


if __name__ == "__main__":
    NF, H, W = 8, 16, 16            # W*NF = 128 -> fully lane-dense blocks
    key = jax.random.PRNGKey(0)
    kx, kw = jax.random.split(key)

    pt_params = make_pt_params(kw, NF)
    k_params = make_kernel_params(pt_params, H, W)

    # N=2 -> Nb=1 (2 parallel grid steps); N=4 -> Nb=2 (exercises the
    # multi-image-per-step batched path).
    for N in (2, 4):
        x = jax.random.normal(jax.random.fold_in(kx, N),
                              (N, NF, H, W), jnp.float32)
        out = jax.block_until_ready(aab_forward(x, k_params))
        ref = jax.block_until_ready(aab_reference(x, pt_params))
        assert out.shape == x.shape
        max_err = float(jnp.max(jnp.abs(out - ref)))
        assert jnp.allclose(out, ref, rtol=2e-4, atol=2e-4), (N, max_err)

    print("KERNEL_OK")
</pallas_src>

<mosaic_0001>
module attributes {stable_mosaic.version = 11 : i64} {
  func.func @aab_kernel(%arg0: i32, %arg1: memref<1x16x128xf32, #tpu.memory_space<vmem>>, %arg2: memref<128x128xf32, #tpu.memory_space<vmem>>, %arg3: memref<128x128xf32, #tpu.memory_space<vmem>>, %arg4: memref<384x384xf32, #tpu.memory_space<vmem>>, %arg5: memref<384x128xf32, #tpu.memory_space<vmem>>, %arg6: memref<128x128xf32, #tpu.memory_space<vmem>>, %arg7: memref<1x128xf32, #tpu.memory_space<vmem>>, %arg8: memref<128x2xf32, #tpu.memory_space<vmem>>, %arg9: memref<2x2xf32, #tpu.memory_space<vmem>>, %arg10: memref<1x16x128xf32, #tpu.memory_space<vmem>>, %arg11: memref<1x18x128xf32, #tpu.memory_space<vmem>>) attributes {dimension_semantics = [#tpu.dimension_semantics<parallel>], iteration_bounds = array<i64: 2>, scalar_prefetch = 0 : i64, scratch_operands = 1 : i64, tpu.core_type = #tpu.core_type<tc>, window_params = [{transform_indices = @transform_0, window_bounds = array<i64: 1, 16, 128>}, {pipeline_mode = #tpu.pipeline_mode<synchronous>, transform_indices = @transform_1, window_bounds = array<i64: 128, 128>}, {pipeline_mode = #tpu.pipeline_mode<synchronous>, transform_indices = @transform_2, window_bounds = array<i64: 128, 128>}, {pipeline_mode = #tpu.pipeline_mode<synchronous>, transform_indices = @transform_3, window_bounds = array<i64: 384, 384>}, {pipeline_mode = #tpu.pipeline_mode<synchronous>, transform_indices = @transform_4, window_bounds = array<i64: 384, 128>}, {pipeline_mode = #tpu.pipeline_mode<synchronous>, transform_indices = @transform_5, window_bounds = array<i64: 128, 128>}, {pipeline_mode = #tpu.pipeline_mode<synchronous>, transform_indices = @transform_6, window_bounds = array<i64: 1, 128>}, {pipeline_mode = #tpu.pipeline_mode<synchronous>, transform_indices = @transform_7, window_bounds = array<i64: 128, 2>}, {pipeline_mode = #tpu.pipeline_mode<synchronous>, transform_indices = @transform_8, window_bounds = array<i64: 2, 2>}, {transform_indices = @transform_9, window_bounds = array<i64: 1, 16, 128>}]} {
    %c0 = arith.constant 0 : index
    %c0_0 = arith.constant 0 : index
    %c0_1 = arith.constant 0 : index
    %0 = vector.load %arg1[%c0, %c0_0, %c0_1] : memref<1x16x128xf32, #tpu.memory_space<vmem>>, vector<1x16x128xf32>
    %1 = vector.shape_cast %0 : vector<1x16x128xf32> to vector<16x128xf32>
    %c0_2 = arith.constant 0 : index
    %c0_3 = arith.constant 0 : index
    %2 = vector.load %arg2[%c0_2, %c0_3] : memref<128x128xf32, #tpu.memory_space<vmem>>, vector<128x128xf32>
    %cst = arith.constant dense<0.000000e+00> : vector<16x128xf32>
    %3 = tpu.matmul %1, %2, %cst {dimension_numbers = #tpu.dot_dimension_numbers<[1], [0], [0], [1], [0, 0, 1, 1], [], []>} : vector<16x128xf32>, vector<128x128xf32>, vector<16x128xf32> -> vector<16x128xf32>
    %cst_4 = arith.constant 0.000000e+00 : f32
    %4 = vector.broadcast %cst_4 : f32 to vector<16x128xf32>
    %5 = arith.cmpf oge, %3, %4 : vector<16x128xf32>
    %cst_5 = arith.constant 2.000000e-01 : f32
    %6 = vector.broadcast %cst_5 : f32 to vector<16x128xf32>
    %7 = arith.mulf %6, %3 : vector<16x128xf32>
    %8 = arith.select %5, %3, %7 : vector<16x128xi1>, vector<16x128xf32>
    %9 = vector.shape_cast %8 : vector<16x128xf32> to vector<1x16x128xf32>
    %cst_6 = arith.constant 0.000000e+00 : f32
    %10 = vector.broadcast %cst_6 : f32 to vector<1x1x128xf32>
    %c0_7 = arith.constant 0 : index
    %c0_8 = arith.constant 0 : index
    %c0_9 = arith.constant 0 : index
    %11 = vector.load %arg11[%c0_7, %c0_8, %c0_9] : memref<1x18x128xf32, #tpu.memory_space<vmem>>, vector<1x1x128xf32>
    tpu.vector_store %arg11[%c0_7, %c0_8, %c0_9], %10 {strides = array<i32>} : memref<1x18x128xf32, #tpu.memory_space<vmem>>, vector<1x1x128xf32>,
    %c0_10 = arith.constant 0 : index
    %c17 = arith.constant 17 : index
    %c0_11 = arith.constant 0 : index
    %12 = vector.load %arg11[%c0_10, %c17, %c0_11] : memref<1x18x128xf32, #tpu.memory_space<vmem>>, vector<1x1x128xf32>
    tpu.vector_store %arg11[%c0_10, %c17, %c0_11], %10 {strides = array<i32>} : memref<1x18x128xf32, #tpu.memory_space<vmem>>, vector<1x1x128xf32>,
    %c0_12 = arith.constant 0 : index
    %c1 = arith.constant 1 : index
    %c0_13 = arith.constant 0 : index
    %13 = vector.load %arg11[%c0_12, %c1, %c0_13] : memref<1x18x128xf32, #tpu.memory_space<vmem>>, vector<1x16x128xf32>
    tpu.vector_store %arg11[%c0_12, %c1, %c0_13], %9 {strides = array<i32>} : memref<1x18x128xf32, #tpu.memory_space<vmem>>, vector<1x16x128xf32>,
    %c0_14 = arith.constant 0 : index
    %c0_15 = arith.constant 0 : index
    %c0_16 = arith.constant 0 : index
    %14 = vector.load %arg11[%c0_14, %c0_15, %c0_16] : memref<1x18x128xf32, #tpu.memory_space<vmem>>, vector<1x16x128xf32>
    %c0_17 = arith.constant 0 : index
    %c2 = arith.constant 2 : index
    %c0_18 = arith.constant 0 : index
    %15 = vector.load %arg11[%c0_17, %c2, %c0_18] : memref<1x18x128xf32, #tpu.memory_space<vmem>>, vector<1x16x128xf32>
    %16 = tpu.concatenate %14, %9, %15 in 2 : vector<1x16x128xf32>, vector<1x16x128xf32>, vector<1x16x128xf32> -> vector<1x16x384xf32>
    %17 = vector.shape_cast %16 : vector<1x16x384xf32> to vector<16x384xf32>
    %c0_19 = arith.constant 0 : index
    %c0_20 = arith.constant 0 : index
    %18 = vector.load %arg4[%c0_19, %c0_20] : memref<384x384xf32, #tpu.memory_space<vmem>>, vector<384x384xf32>
    %cst_21 = arith.constant dense<0.000000e+00> : vector<16x384xf32>
    %19 = tpu.matmul %17, %18, %cst_21 {dimension_numbers = #tpu.dot_dimension_numbers<[1], [0], [0], [1], [0, 0, 1, 1], [], []>} : vector<16x384xf32>, vector<384x384xf32>, vector<16x384xf32> -> vector<16x384xf32>
    %20 = vector.extract_strided_slice %19 {offsets = [0, 0], sizes = [16, 128], strides = [1, 1]} : vector<16x384xf32> to vector<16x128xf32>
    %21 = vector.extract_strided_slice %19 {offsets = [0, 128], sizes = [16, 128], strides = [1, 1]} : vector<16x384xf32> to vector<16x128xf32>
    %22 = vector.extract_strided_slice %19 {offsets = [0, 256], sizes = [16, 128], strides = [1, 1]} : vector<16x384xf32> to vector<16x128xf32>
    %cst_22 = arith.constant 0.000000e+00 : f32
    %23 = vector.broadcast %cst_22 : f32 to vector<16x128xf32>
    %24 = arith.cmpf oge, %20, %23 : vector<16x128xf32>
    %cst_23 = arith.constant 2.000000e-01 : f32
    %25 = vector.broadcast %cst_23 : f32 to vector<16x128xf32>
    %26 = arith.mulf %25, %20 : vector<16x128xf32>
    %27 = arith.select %24, %20, %26 : vector<16x128xi1>, vector<16x128xf32>
    %c0_24 = arith.constant 0 : index
    %c0_25 = arith.constant 0 : index
    %28 = vector.load %arg6[%c0_24, %c0_25] : memref<128x128xf32, #tpu.memory_space<vmem>>, vector<128x128xf32>
    %cst_26 = arith.constant dense<0.000000e+00> : vector<16x128xf32>
    %29 = tpu.matmul %27, %28, %cst_26 {dimension_numbers = #tpu.dot_dimension_numbers<[1], [0], [0], [1], [0, 0, 1, 1], [], []>} : vector<16x128xf32>, vector<128x128xf32>, vector<16x128xf32> -> vector<16x128xf32>
    %c0_27 = arith.constant 0 : index
    %c0_28 = arith.constant 0 : index
    %30 = vector.load %arg7[%c0_27, %c0_28] : memref<1x128xf32, #tpu.memory_space<vmem>>, vector<1x128xf32>
    %31 = vector.broadcast %30 : vector<1x128xf32> to vector<16x128xf32>
    %32 = arith.addf %29, %31 : vector<16x128xf32>
    %33 = arith.negf %32 : vector<16x128xf32>
    %34 = math.exp %33 : vector<16x128xf32>
    %cst_29 = arith.constant 1.000000e+00 : f32
    %35 = vector.broadcast %cst_29 : f32 to vector<16x128xf32>
    %36 = arith.addf %35, %34 : vector<16x128xf32>
    %37 = arith.divf %35, %36 : vector<16x128xf32>
    %38 = arith.mulf %21, %37 : vector<16x128xf32>
    %39 = vector.shape_cast %38 : vector<16x128xf32> to vector<1x16x128xf32>
    %c0_30 = arith.constant 0 : index
    %c1_31 = arith.constant 1 : index
    %c0_32 = arith.constant 0 : index
    %40 = vector.load %arg11[%c0_30, %c1_31, %c0_32] : memref<1x18x128xf32, #tpu.memory_space<vmem>>, vector<1x16x128xf32>
    tpu.vector_store %arg11[%c0_30, %c1_31, %c0_32], %39 {strides = array<i32>} : memref<1x18x128xf32, #tpu.memory_space<vmem>>, vector<1x16x128xf32>,
    %c0_33 = arith.constant 0 : index
    %c0_34 = arith.constant 0 : index
    %c0_35 = arith.constant 0 : index
    %41 = vector.load %arg11[%c0_33, %c0_34, %c0_35] : memref<1x18x128xf32, #tpu.memory_space<vmem>>, vector<1x16x128xf32>
    %c0_36 = arith.constant 0 : index
    %c2_37 = arith.constant 2 : index
    %c0_38 = arith.constant 0 : index
    %42 = vector.load %arg11[%c0_36, %c2_37, %c0_38] : memref<1x18x128xf32, #tpu.memory_space<vmem>>, vector<1x16x128xf32>
    %43 = tpu.concatenate %41, %39, %42 in 2 : vector<1x16x128xf32>, vector<1x16x128xf32>, vector<1x16x128xf32> -> vector<1x16x384xf32>
    %44 = vector.shape_cast %43 : vector<1x16x384xf32> to vector<16x384xf32>
    %c0_39 = arith.constant 0 : index
    %c0_40 = arith.constant 0 : index
    %45 = vector.load %arg5[%c0_39, %c0_40] : memref<384x128xf32, #tpu.memory_space<vmem>>, vector<384x128xf32>
    %cst_41 = arith.constant dense<0.000000e+00> : vector<16x128xf32>
    %46 = tpu.matmul %44, %45, %cst_41 {dimension_numbers = #tpu.dot_dimension_numbers<[1], [0], [0], [1], [0, 0, 1, 1], [], []>} : vector<16x384xf32>, vector<384x128xf32>, vector<16x128xf32> -> vector<16x128xf32>
    %cst_42 = arith.constant dense<0.000000e+00> : vector<1x128xf32>
    %47 = vector.multi_reduction <add>, %9, %cst_42 [1] : vector<1x16x128xf32> to vector<1x128xf32>
    %c0_43 = arith.constant 0 : index
    %c0_44 = arith.constant 0 : index
    %48 = vector.load %arg8[%c0_43, %c0_44] : memref<128x2xf32, #tpu.memory_space<vmem>>, vector<128x2xf32>
    %cst_45 = arith.constant dense<0.000000e+00> : vector<1x2xf32>
    %49 = tpu.matmul %47, %48, %cst_45 {dimension_numbers = #tpu.dot_dimension_numbers<[1], [0], [0], [1], [0, 0, 1, 1], [], []>} : vector<1x128xf32>, vector<128x2xf32>, vector<1x2xf32> -> vector<1x2xf32>
    %cst_46 = arith.constant 0.000000e+00 : f32
    %50 = vector.broadcast %cst_46 : f32 to vector<1x2xf32>
    %51 = arith.maximumf %49, %50 : vector<1x2xf32>
    %c0_47 = arith.constant 0 : index
    %c0_48 = arith.constant 0 : index
    %52 = vector.load %arg9[%c0_47, %c0_48] : memref<2x2xf32, #tpu.memory_space<vmem>>, vector<2x2xf32>
    %cst_49 = arith.constant dense<0.000000e+00> : vector<1x2xf32>
    %53 = tpu.matmul %51, %52, %cst_49 {dimension_numbers = #tpu.dot_dimension_numbers<[1], [0], [0], [1], [0, 0, 1, 1], [], []>} : vector<1x2xf32>, vector<2x2xf32>, vector<1x2xf32> -> vector<1x2xf32>
    %cst_50 = arith.constant 3.000000e+01 : f32
    %54 = vector.broadcast %cst_50 : f32 to vector<1x2xf32>
    %55 = arith.divf %53, %54 : vector<1x2xf32>
    %cst_51 = arith.constant dense<0xFF800000> : vector<1xf32>
    %56 = vector.multi_reduction <maximumf>, %55, %cst_51 [1] : vector<1x2xf32> to vector<1xf32>
    %57 = vector.shape_cast %56 : vector<1xf32> to vector<1x1xf32>
    %58 = vector.broadcast %57 : vector<1x1xf32> to vector<1x2xf32>
    %59 = arith.subf %55, %58 : vector<1x2xf32>
    %60 = math.exp %59 : vector<1x2xf32>
    %cst_52 = arith.constant dense<0.000000e+00> : vector<1xf32>
    %61 = vector.multi_reduction <add>, %60, %cst_52 [1] : vector<1x2xf32> to vector<1xf32>
    %62 = vector.shape_cast %61 : vector<1xf32> to vector<1x1xf32>
    %63 = vector.broadcast %62 : vector<1x1xf32> to vector<1x2xf32>
    %64 = arith.divf %60, %63 : vector<1x2xf32>
    %65 = vector.extract_strided_slice %64 {offsets = [0, 0], sizes = [1, 1], strides = [1, 1]} : vector<1x2xf32> to vector<1x1xf32>
    %66 = vector.shape_cast %65 : vector<1x1xf32> to vector<1x1x1xf32>
    %67 = vector.extract_strided_slice %64 {offsets = [0, 1], sizes = [1, 1], strides = [1, 1]} : vector<1x2xf32> to vector<1x1xf32>
    %68 = vector.shape_cast %67 : vector<1x1xf32> to vector<1x1x1xf32>
    %69 = vector.shape_cast %46 : vector<16x128xf32> to vector<1x16x128xf32>
    %70 = vector.broadcast %66 : vector<1x1x1xf32> to vector<1x16x128xf32>
    %71 = arith.mulf %69, %70 : vector<1x16x128xf32>
    %72 = vector.shape_cast %22 : vector<16x128xf32> to vector<1x16x128xf32>
    %73 = vector.broadcast %68 : vector<1x1x1xf32> to vector<1x16x128xf32>
    %74 = arith.mulf %72, %73 : vector<1x16x128xf32>
    %75 = arith.addf %71, %74 : vector<1x16x128xf32>
    %cst_53 = arith.constant 0.000000e+00 : f32
    %76 = vector.broadcast %cst_53 : f32 to vector<1x16x128xf32>
    %77 = arith.cmpf oge, %75, %76 : vector<1x16x128xf32>
    %cst_54 = arith.constant 2.000000e-01 : f32
    %78 = vector.broadcast %cst_54 : f32 to vector<1x16x128xf32>
    %79 = arith.mulf %78, %75 : vector<1x16x128xf32>
    %80 = arith.select %77, %75, %79 : vector<1x16x128xi1>, vector<1x16x128xf32>
    %81 = vector.shape_cast %80 : vector<1x16x128xf32> to vector<16x128xf32>
    %c0_55 = arith.constant 0 : index
    %c0_56 = arith.constant 0 : index
    %82 = vector.load %arg3[%c0_55, %c0_56] : memref<128x128xf32, #tpu.memory_space<vmem>>, vector<128x128xf32>
    %cst_57 = arith.constant dense<0.000000e+00> : vector<16x128xf32>
    %83 = tpu.matmul %81, %82, %cst_57 {dimension_numbers = #tpu.dot_dimension_numbers<[1], [0], [0], [1], [0, 0, 1, 1], [], []>} : vector<16x128xf32>, vector<128x128xf32>, vector<16x128xf32> -> vector<16x128xf32>
    %84 = arith.addf %83, %1 : vector<16x128xf32>
    %85 = vector.shape_cast %84 : vector<16x128xf32> to vector<1x16x128xf32>
    %c0_58 = arith.constant 0 : index
    %c0_59 = arith.constant 0 : index
    %c0_60 = arith.constant 0 : index
    %86 = vector.load %arg10[%c0_58, %c0_59, %c0_60] : memref<1x16x128xf32, #tpu.memory_space<vmem>>, vector<1x16x128xf32>
    tpu.vector_store %arg10[%c0_58, %c0_59, %c0_60], %85 {strides = array<i32>} : memref<1x16x128xf32, #tpu.memory_space<vmem>>, vector<1x16x128xf32>,
    return
  }
  func.func @transform_0(%arg0: i32) -> (i32, i32, i32) {
    %c0_i32 = arith.constant 0 : i32
    %c0_i32_0 = arith.constant 0 : i32
    %c0_i32_1 = arith.constant 0 : i32
    return %arg0, %c0_i32, %c0_i32_0 : i32, i32, i32
  }
  func.func @transform_1(%arg0: i32) -> (i32, i32) {
    %c0_i32 = arith.constant 0 : i32
    %c0_i32_0 = arith.constant 0 : i32
    %c0_i32_1 = arith.constant 0 : i32
    return %c0_i32, %c0_i32_0 : i32, i32
  }
  func.func @transform_2(%arg0: i32) -> (i32, i32) {
    %c0_i32 = arith.constant 0 : i32
    %c0_i32_0 = arith.constant 0 : i32
    %c0_i32_1 = arith.constant 0 : i32
    return %c0_i32, %c0_i32_0 : i32, i32
  }
  func.func @transform_3(%arg0: i32) -> (i32, i32) {
    %c0_i32 = arith.constant 0 : i32
    %c0_i32_0 = arith.constant 0 : i32
    %c0_i32_1 = arith.constant 0 : i32
    return %c0_i32, %c0_i32_0 : i32, i32
  }
  func.func @transform_4(%arg0: i32) -> (i32, i32) {
    %c0_i32 = arith.constant 0 : i32
    %c0_i32_0 = arith.constant 0 : i32
    %c0_i32_1 = arith.constant 0 : i32
    return %c0_i32, %c0_i32_0 : i32, i32
  }
  func.func @transform_5(%arg0: i32) -> (i32, i32) {
    %c0_i32 = arith.constant 0 : i32
    %c0_i32_0 = arith.constant 0 : i32
    %c0_i32_1 = arith.constant 0 : i32
    return %c0_i32, %c0_i32_0 : i32, i32
  }
  func.func @transform_6(%arg0: i32) -> (i32, i32) {
    %c0_i32 = arith.constant 0 : i32
    %c0_i32_0 = arith.constant 0 : i32
    %c0_i32_1 = arith.constant 0 : i32
    return %c0_i32, %c0_i32_0 : i32, i32
  }
  func.func @transform_7(%arg0: i32) -> (i32, i32) {
    %c0_i32 = arith.constant 0 : i32
    %c0_i32_0 = arith.constant 0 : i32
    %c0_i32_1 = arith.constant 0 : i32
    return %c0_i32, %c0_i32_0 : i32, i32
  }
  func.func @transform_8(%arg0: i32) -> (i32, i32) {
    %c0_i32 = arith.constant 0 : i32
    %c0_i32_0 = arith.constant 0 : i32
    %c0_i32_1 = arith.constant 0 : i32
    return %c0_i32, %c0_i32_0 : i32, i32
  }
  func.func @transform_9(%arg0: i32) -> (i32, i32, i32) {
    %c0_i32 = arith.constant 0 : i32
    %c0_i32_0 = arith.constant 0 : i32
    %c0_i32_1 = arith.constant 0 : i32
    return %arg0, %c0_i32, %c0_i32_0 : i32, i32, i32
  }
}

</mosaic_0001>

<llo_original>
// kernel: tpu_custom_call.1
$region0: #{tpu_custom_call.1}
  #allocation0 [shape = 'u32[]', space=smem, size = 0x4, offset = 0x4, fixed_abs, tag = 'smem constant byte address 0x4 - core index']
  #allocation1 [shape = 'u32[144,128]{1,0:T(1,128)}', space=vmem, size = 0x12000, scoped, tag = 'internal scratch']
  #allocation2 [shape = 'f32[1,18,128]{2,1,0:T(8,128)}', space=vmem, size = 0x3000, scoped, tag = 'scratch operand']
  %s0 = inlined_call_operand.hbm [shape: f32[2,16,128], index: 0, kind: input, shape index: {}]
  %s1 = inlined_call_operand.vmem [shape: f32[128,128], index: 1, kind: input, shape index: {}]
  %s2 = inlined_call_operand.hbm [shape: f32[128,128], index: 2, kind: input, shape index: {}]
  %s3 = inlined_call_operand.hbm [shape: f32[384,384], index: 3, kind: input, shape index: {}]
  %s4 = inlined_call_operand.hbm [shape: f32[384,128], index: 4, kind: input, shape index: {}]
  %s5 = inlined_call_operand.hbm [shape: f32[128,128], index: 5, kind: input, shape index: {}]
  %s6 = inlined_call_operand.vmem [shape: f32[1,128], index: 6, kind: input, shape index: {}]
  %s7 = inlined_call_operand.vmem [shape: f32[128,2], index: 7, kind: input, shape index: {}]
  %s8 = inlined_call_operand.vmem [shape: f32[2,2], index: 8, kind: input, shape index: {}]
  %s9 = inlined_call_operand.hbm [shape: f32[2,16,128], index: 9, kind: output, shape index: {}]
  %s10 = sld [smem:[#allocation0]]
  $region89: #{tpu_custom_call.1} parent=0
    _
  %s12 = ssub.s32 1, %s10
  %s13 = scalar_select 0, %s12, %s10
  $region1: #{tpu_custom_call.1} parent=0
    #allocation3 [shape = 'u8[16384]{0}', space=vmem, size = 0x4000, scoped, tag = 'input window, operand 0']
    #allocation4 [shape = 's32[2]{0}', space=sflag, size = 0x8, scoped, tag = 'scoped memory for tpu_custom_call.1']
    #allocation5 [shape = 's32[2]{0}', space=sflag, size = 0x8, scoped, tag = 'scoped memory for tpu_custom_call.1']
    #allocation6 [shape = 'u8[65536]{0}', space=vmem, size = 0x10000, scoped, tag = 'input window, operand 2, single buffered']
    #allocation7 [shape = 's32[1]{0}', space=sflag, size = 0x4, scoped, tag = 'scoped memory for tpu_custom_call.1']
    #allocation8 [shape = 'u8[589824]{0}', space=vmem, size = 0x90000, scoped, tag = 'input window, operand 3, single buffered']
    #allocation9 [shape = 'u8[196608]{0}', space=vmem, size = 0x30000, scoped, tag = 'input window, operand 4, single buffered']
    #allocation10 [shape = 's32[1]{0}', space=sflag, size = 0x4, scoped, tag = 'scoped memory for tpu_custom_call.1']
    #allocation11 [shape = 'u8[65536]{0}', space=vmem, size = 0x10000, scoped, tag = 'input window, operand 5, single buffered']
    #allocation12 [shape = 'u8[16384]{0}', space=vmem, size = 0x4000, scoped, tag = 'output window, operand 0']
    %14 = vsyncpa [#allocation4], 0
    %s15 = scalar_lea.sflag [#allocation4], 1
    %16 = vsyncpa %s15, 0
    %17 = vsyncpa [#allocation7], 0
    %18 = vsyncpa [#allocation10], 0
    %19 = vsyncpa [#allocation5], 0
    %s20 = scalar_lea.sflag [#allocation5], 1
    %21 = vsyncpa %s20, 0
    loop: start=0, step=1, limit=4
    $region2: #{tpu_custom_call.1} parent=1 // loop_pre_header
      _
    $region3: #{tpu_custom_call.1} parent=1 // loop_header
      %s23 = sphi 0, %s27
      %p24 = scmp.ge.s32.totalorder %s23, 4
      %s33 = sphi 0, %s35
      %s36 = sphi 0, %s33
      %s37 = sphi 0, %s36
      %s53 = sphi 0, %s37
      %s57 = sphi 0, %s57
      %s59 = sphi 0, %s57
      %s60 = sphi 0, %s59
      %s74 = sphi 0, %s60
      %s78 = sphi 0, %s78
      %s80 = sphi 0, %s78
      %s81 = sphi 0, %s80
      %s95 = sphi 0, %s81
      %s99 = sphi 0, %s99
      %s101 = sphi 0, %s99
      %s102 = sphi 0, %s101
      %s116 = sphi 0, %s102
      %s120 = sphi 0, %s120
      %s122 = sphi 0, %s120
      %s123 = sphi 0, %s122
      %s137 = sphi 0, %s123
      %s141 = sphi 0, %s141
      %s143 = sphi 0, %s141
      %s144 = sphi 0, %s143
      %s158 = sphi 0, %s144
      %s162 = sphi 0, %s162
      %s164 = sphi 0, %s162
      %s165 = sphi 0, %s164
      %s179 = sphi 0, %s165
      %s183 = sphi 0, %s183
      %s185 = sphi 0, %s183
      %s186 = sphi 0, %s185
      %s200 = sphi 0, %s186
      %s204 = sphi 0, %s204
      %s206 = sphi 0, %s204
      %s207 = sphi 0, %s206
      %s221 = sphi 0, %s207
      %s227 = sphi 0, %s229
      %s230 = sphi 0, %s227
      %s231 = sphi 0, %s230
      %s247 = sphi 0, %s231
    $region4: #{tpu_custom_call.1} parent=1 // loop_header_branch
      %26 = sbr.rel (%p24) target = $region8
    $region5: #{tpu_custom_call.1} parent=1 // loop_body
      %s28 = ssub.s32 %s23, 1
      %s29 = ssub.s32 %s23, 2
      %s30 = sadd.s32 %s23, 1
      %s31 = ssub.s32 %s23, %s30
      %p32 = scmp.eq.s32.totalorder %s31, 0
      %s34 = sadd.s32 %s33, 1
      %s35 = scalar_select %p32, %s33, %s34
      %p38 = pneg %p32
      %p39 = scmp.eq.s32.totalorder %s23, 1
      %p40 = por %p38, %p39
      %p41 = scmp.ne.s32.totalorder %s33, %s36
      %p42 = scmp.eq.s32.totalorder %s23, 0
      %p43 = por %p41, %p42
      %p44 = scmp.ne.s32.totalorder %s33, %s36
      %p45 = scmp.eq.s32.totalorder %s28, 1
      %p46 = por %p44, %p45
      %p47 = scmp.ne.s32.totalorder %s36, %s37
      %p48 = scmp.eq.s32.totalorder %s28, 0
      %p49 = por %p47, %p48
      %p50 = scmp.ne.s32.totalorder %s36, %s37
      %p51 = scmp.eq.s32.totalorder %s29, 1
      %p52 = por %p50, %p51
      %p54 = scmp.ne.s32.totalorder %s37, %s53
      %p55 = scmp.eq.s32.totalorder %s29, 0
      %p56 = por %p54, %p55
      %s58 = sadd.s32 %s57, 1
      %p61 = scmp.eq.s32.totalorder %s23, 1
      %p62 = scmp.ne.s32.totalorder %s57, %s59
      %p63 = scmp.eq.s32.totalorder %s23, 0
      %p64 = por %p62, %p63
      %p65 = scmp.ne.s32.totalorder %s57, %s59
      %p66 = scmp.eq.s32.totalorder %s28, 1
      %p67 = por %p65, %p66
      %p68 = scmp.ne.s32.totalorder %s59, %s60
      %p69 = scmp.eq.s32.totalorder %s28, 0
      %p70 = por %p68, %p69
      %p71 = scmp.ne.s32.totalorder %s59, %s60
      %p72 = scmp.eq.s32.totalorder %s29, 1
      %p73 = por %p71, %p72
      %p75 = scmp.ne.s32.totalorder %s60, %s74
      %p76 = scmp.eq.s32.totalorder %s29, 0
      %p77 = por %p75, %p76
      %s79 = sadd.s32 %s78, 1
      %p82 = scmp.eq.s32.totalorder %s23, 1
      %p83 = scmp.ne.s32.totalorder %s78, %s80
      %p84 = scmp.eq.s32.totalorder %s23, 0
      %p85 = por %p83, %p84
      %p86 = scmp.ne.s32.totalorder %s78, %s80
      %p87 = scmp.eq.s32.totalorder %s28, 1
      %p88 = por %p86, %p87
      %p89 = scmp.ne.s32.totalorder %s80, %s81
      %p90 = scmp.eq.s32.totalorder %s28, 0
      %p91 = por %p89, %p90
      %p92 = scmp.ne.s32.totalorder %s80, %s81
      %p93 = scmp.eq.s32.totalorder %s29, 1
      %p94 = por %p92, %p93
      %p96 = scmp.ne.s32.totalorder %s81, %s95
      %p97 = scmp.eq.s32.totalorder %s29, 0
      %p98 = por %p96, %p97
      %s100 = sadd.s32 %s99, 1
      %p103 = scmp.eq.s32.totalorder %s23, 1
      %p104 = scmp.ne.s32.totalorder %s99, %s101
      %p105 = scmp.eq.s32.totalorder %s23, 0
      %p106 = por %p104, %p105
      %p107 = scmp.ne.s32.totalorder %s99, %s101
      %p108 = scmp.eq.s32.totalorder %s28, 1
      %p109 = por %p107, %p108
      %p110 = scmp.ne.s32.totalorder %s101, %s102
      %p111 = scmp.eq.s32.totalorder %s28, 0
      %p112 = por %p110, %p111
      %p113 = scmp.ne.s32.totalorder %s101, %s102
      %p114 = scmp.eq.s32.totalorder %s29, 1
      %p115 = por %p113, %p114
      %p117 = scmp.ne.s32.totalorder %s102, %s116
      %p118 = scmp.eq.s32.totalorder %s29, 0
      %p119 = por %p117, %p118
      %s121 = sadd.s32 %s120, 1
      %p124 = scmp.eq.s32.totalorder %s23, 1
      %p125 = scmp.ne.s32.totalorder %s120, %s122
      %p126 = scmp.eq.s32.totalorder %s23, 0
      %p127 = por %p125, %p126
      %p128 = scmp.ne.s32.totalorder %s120, %s122
      %p129 = scmp.eq.s32.totalorder %s28, 1
      %p130 = por %p128, %p129
      %p131 = scmp.ne.s32.totalorder %s122, %s123
      %p132 = scmp.eq.s32.totalorder %s28, 0
      %p133 = por %p131, %p132
      %p134 = scmp.ne.s32.totalorder %s122, %s123
      %p135 = scmp.eq.s32.totalorder %s29, 1
      %p136 = por %p134, %p135
      %p138 = scmp.ne.s32.totalorder %s123, %s137
      %p139 = scmp.eq.s32.totalorder %s29, 0
      %p140 = por %p138, %p139
      %s142 = sadd.s32 %s141, 1
      %p145 = scmp.eq.s32.totalorder %s23, 1
      %p146 = scmp.ne.s32.totalorder %s141, %s143
      %p147 = scmp.eq.s32.totalorder %s23, 0
      %p148 = por %p146, %p147
      %p149 = scmp.ne.s32.totalorder %s141, %s143
      %p150 = scmp.eq.s32.totalorder %s28, 1
      %p151 = por %p149, %p150
      %p152 = scmp.ne.s32.totalorder %s143, %s144
      %p153 = scmp.eq.s32.totalorder %s28, 0
      %p154 = por %p152, %p153
      %p155 = scmp.ne.s32.totalorder %s143, %s144
      %p156 = scmp.eq.s32.totalorder %s29, 1
      %p157 = por %p155, %p156
      %p159 = scmp.ne.s32.totalorder %s144, %s158
      %p160 = scmp.eq.s32.totalorder %s29, 0
      %p161 = por %p159, %p160
      %s163 = sadd.s32 %s162, 1
      %p166 = scmp.eq.s32.totalorder %s23, 1
      %p167 = scmp.ne.s32.totalorder %s162, %s164
      %p168 = scmp.eq.s32.totalorder %s23, 0
      %p169 = por %p167, %p168
      %p170 = scmp.ne.s32.totalorder %s162, %s164
      %p171 = scmp.eq.s32.totalorder %s28, 1
      %p172 = por %p170, %p171
      %p173 = scmp.ne.s32.totalorder %s164, %s165
      %p174 = scmp.eq.s32.totalorder %s28, 0
      %p175 = por %p173, %p174
      %p176 = scmp.ne.s32.totalorder %s164, %s165
      %p177 = scmp.eq.s32.totalorder %s29, 1
      %p178 = por %p176, %p177
      %p180 = scmp.ne.s32.totalorder %s165, %s179
      %p181 = scmp.eq.s32.totalorder %s29, 0
      %p182 = por %p180, %p181
      %s184 = sadd.s32 %s183, 1
      %p187 = scmp.eq.s32.totalorder %s23, 1
      %p188 = scmp.ne.s32.totalorder %s183, %s185
      %p189 = scmp.eq.s32.totalorder %s23, 0
      %p190 = por %p188, %p189
      %p191 = scmp.ne.s32.totalorder %s183, %s185
      %p192 = scmp.eq.s32.totalorder %s28, 1
      %p193 = por %p191, %p192
      %p194 = scmp.ne.s32.totalorder %s185, %s186
      %p195 = scmp.eq.s32.totalorder %s28, 0
      %p196 = por %p194, %p195
      %p197 = scmp.ne.s32.totalorder %s185, %s186
      %p198 = scmp.eq.s32.totalorder %s29, 1
      %p199 = por %p197, %p198
      %p201 = scmp.ne.s32.totalorder %s186, %s200
      %p202 = scmp.eq.s32.totalorder %s29, 0
      %p203 = por %p201, %p202
      %s205 = sadd.s32 %s204, 1
      %p208 = scmp.eq.s32.totalorder %s23, 1
      %p209 = scmp.ne.s32.totalorder %s204, %s206
      %p210 = scmp.eq.s32.totalorder %s23, 0
      %p211 = por %p209, %p210
      %p212 = scmp.ne.s32.totalorder %s204, %s206
      %p213 = scmp.eq.s32.totalorder %s28, 1
      %p214 = por %p212, %p213
      %p215 = scmp.ne.s32.totalorder %s206, %s207
      %p216 = scmp.eq.s32.totalorder %s28, 0
      %p217 = por %p215, %p216
      %p218 = scmp.ne.s32.totalorder %s206, %s207
      %p219 = scmp.eq.s32.totalorder %s29, 1
      %p220 = por %p218, %p219
      %p222 = scmp.ne.s32.totalorder %s207, %s221
      %p223 = scmp.eq.s32.totalorder %s29, 0
      %p224 = por %p222, %p223
      %s225 = ssub.s32 %s23, %s30
      %p226 = scmp.eq.s32.totalorder %s225, 0
      %s228 = sadd.s32 %s227, 1
      %s229 = scalar_select %p226, %s227, %s228
      %p232 = pneg %p226
      %p233 = scmp.eq.s32.totalorder %s23, 1
      %p234 = por %p232, %p233
      %p235 = scmp.ne.s32.totalorder %s227, %s230
      %p236 = scmp.eq.s32.totalorder %s23, 0
      %p237 = por %p235, %p236
      %p238 = scmp.ne.s32.totalorder %s227, %s230
      %p239 = scmp.eq.s32.totalorder %s28, 1
      %p240 = por %p238, %p239
      %p241 = scmp.ne.s32.totalorder %s230, %s231
      %p242 = scmp.eq.s32.totalorder %s28, 0
      %p243 = por %p241, %p242
      %p244 = scmp.ne.s32.totalorder %s230, %s231
      %p245 = scmp.eq.s32.totalorder %s29, 1
      %p246 = por %p244, %p245
      %p248 = scmp.ne.s32.totalorder %s231, %s247
      %p249 = scmp.eq.s32.totalorder %s29, 0
      %p250 = por %p248, %p249
      %p251 = scmp.le.s32.totalorder 1, %s23
      %p252 = scmp.lt.s32.totalorder %s23, 3
      %p253 = pnand %p251, %p252
      %p254 = pneg %p253
      // Predicated region
      $region9: #{tpu_custom_call.1} parent=5 // pred_check
        _
      $region10: #{tpu_custom_call.1} parent=5 // pred_check_branch
        %256 = sbr.rel (%p253) target = $region12
      $region11: #{tpu_custom_call.1} parent=5 // pred_region
        %s257 = ssub.s32 %s23, 1
        // Predicated region
        $region13: #{tpu_custom_call.1} parent=11 // pred_check
          %p258 = pneg %p70
        $region14: #{tpu_custom_call.1} parent=11 // pred_check_branch
          %260 = sbr.rel (%p258) target = $region16
        $region15: #{tpu_custom_call.1} parent=11 // pred_region
          _
        $region16: #{tpu_custom_call.1} parent=11 // pred_fallthru
          _
        // Predicated region
        $region17: #{tpu_custom_call.1} parent=11 // pred_check
          %p261 = pneg %p91
        $region18: #{tpu_custom_call.1} parent=11 // pred_check_branch
          %263 = sbr.rel (%p261) target = $region20
        $region19: #{tpu_custom_call.1} parent=11 // pred_region
          %s265 = ssub.s32 2048, 2048
          %266 = vsyncadd [#allocation7], %s265
          %s267 = sshll.u32 [#allocation6], 4
          %s268 = int_to_ptr.vmem [resolvable:$true] %s267
          %273 = dma.hbm_to_vmem [thread:$0]  %s2, 2048, %s268, [#allocation7], 128, 128, 8
        $region20: #{tpu_custom_call.1} parent=11 // pred_fallthru
          _
        // Predicated region
        $region21: #{tpu_custom_call.1} parent=11 // pred_check
          %p274 = pneg %p112
        $region22: #{tpu_custom_call.1} parent=11 // pred_check_branch
          %276 = sbr.rel (%p274) target = $region24
        $region23: #{tpu_custom_call.1} parent=11 // pred_region
          %s278 = ssub.s32 18432, 18432
          %279 = vsyncadd [#allocation7], %s278
          %s280 = sshll.u32 [#allocation8], 4
          %s281 = int_to_ptr.vmem [resolvable:$true] %s280
          %286 = dma.hbm_to_vmem [thread:$0]  %s3, 18432, %s281, [#allocation7], 384, 384, 24
        $region24: #{tpu_custom_call.1} parent=11 // pred_fallthru
          _
        // Predicated region
        $region25: #{tpu_custom_call.1} parent=11 // pred_check
          %p287 = pneg %p133
        $region26: #{tpu_custom_call.1} parent=11 // pred_check_branch
          %289 = sbr.rel (%p287) target = $region28
        $region27: #{tpu_custom_call.1} parent=11 // pred_region
          %s291 = ssub.s32 6144, 6144
          %292 = vsyncadd [#allocation10], %s291
          %s293 = sshll.u32 [#allocation9], 4
          %s294 = int_to_ptr.vmem [resolvable:$true] %s293
          %299 = dma.hbm_to_vmem [thread:$0]  %s4, 6144, %s294, [#allocation10], 128, 128, 8
        $region28: #{tpu_custom_call.1} parent=11 // pred_fallthru
          _
        // Predicated region
        $region29: #{tpu_custom_call.1} parent=11 // pred_check
          %p300 = pneg %p154
        $region30: #{tpu_custom_call.1} parent=11 // pred_check_branch
          %302 = sbr.rel (%p300) target = $region32
        $region31: #{tpu_custom_call.1} parent=11 // pred_region
          %s304 = ssub.s32 2048, 2048
          %305 = vsyncadd [#allocation10], %s304
          %s306 = sshll.u32 [#allocation11], 4
          %s307 = int_to_ptr.vmem [resolvable:$true] %s306
          %312 = dma.hbm_to_vmem [thread:$0]  %s5, 2048, %s307, [#allocation10], 128, 128, 8
        $region32: #{tpu_custom_call.1} parent=11 // pred_fallthru
          _
        // Predicated region
        $region33: #{tpu_custom_call.1} parent=11 // pred_check
          %p313 = pneg %p175
        $region34: #{tpu_custom_call.1} parent=11 // pred_check_branch
          %315 = sbr.rel (%p313) target = $region36
        $region35: #{tpu_custom_call.1} parent=11 // pred_region
          _
        $region36: #{tpu_custom_call.1} parent=11 // pred_fallthru
          _
        // Predicated region
        $region37: #{tpu_custom_call.1} parent=11 // pred_check
          %p316 = pneg %p196
        $region38: #{tpu_custom_call.1} parent=11 // pred_check_branch
          %318 = sbr.rel (%p316) target = $region40
        $region39: #{tpu_custom_call.1} parent=11 // pred_region
          _
        $region40: #{tpu_custom_call.1} parent=11 // pred_fallthru
          _
        // Predicated region
        $region41: #{tpu_custom_call.1} parent=11 // pred_check
          %p319 = pneg %p217
        $region42: #{tpu_custom_call.1} parent=11 // pred_check_branch
          %321 = sbr.rel (%p319) target = $region44
        $region43: #{tpu_custom_call.1} parent=11 // pred_region
          _
        $region44: #{tpu_custom_call.1} parent=11 // pred_fallthru
          _
      $region12: #{tpu_custom_call.1} parent=5 // pred_fallthru
        _
      %p322 = scmp.lt.s32.totalorder %s23, 2
      // Predicated region
      $region45: #{tpu_custom_call.1} parent=5 // pred_check
        %p323 = pneg %p322
      $region46: #{tpu_custom_call.1} parent=5 // pred_check_branch
        %325 = sbr.rel (%p323) target = $region48
      $region47: #{tpu_custom_call.1} parent=5 // pred_region
        // Predicated region
        $region49: #{tpu_custom_call.1} parent=47 // pred_check
          %p326 = pneg %p43
        $region50: #{tpu_custom_call.1} parent=47 // pred_check_branch
          %328 = sbr.rel (%p326) target = $region52
        $region51: #{tpu_custom_call.1} parent=47 // pred_region
          %s329 = sand.u32 %s33, 1
          %s330 = scalar_lea.sflag [#allocation4], %s329
          %s331 = sand.u32 %s33, 1
          %s332 = smul.addr %s331, 16
          %s333 = scalar_lea.vmem [#allocation3], %s332
          %s335 = ssub.s32 256, 256
          %336 = vsyncadd %s330, %s335
          %s337 = smul.addr %s23, 2
          %s338 = smul.addr %s337, 128
          %s339 = scalar_lea.hbm %s0, %s338
          %s340 = sshll.u32 %s333, 4
          %s341 = int_to_ptr.vmem [resolvable:$true] %s340
          %346 = dma.hbm_to_vmem [thread:$0]  %s339, 256, %s341, %s330, 128, 128, 8
        $region52: #{tpu_custom_call.1} parent=47 // pred_fallthru
          _
      $region48: #{tpu_custom_call.1} parent=5 // pred_fallthru
        _
      %p347 = scmp.le.s32.totalorder 1, %s23
      %p348 = scmp.lt.s32.totalorder %s23, 3
      %p349 = pnand %p347, %p348
      %p350 = pneg %p349
      // Predicated region
      $region53: #{tpu_custom_call.1} parent=5 // pred_check
        _
      $region54: #{tpu_custom_call.1} parent=5 // pred_check_branch
        %352 = sbr.rel (%p349) target = $region56
      $region55: #{tpu_custom_call.1} parent=5 // pred_region
        %s353 = ssub.s32 %s23, 1
        %s354 = sand.u32 %s36, 1
        %s355 = scalar_lea.sflag [#allocation4], %s354
        %s356 = sand.u32 %s36, 1
        %s357 = smul.addr %s356, 16
        %s358 = scalar_lea.vmem [#allocation3], %s357
        // Predicated region
        $region57: #{tpu_custom_call.1} parent=55 // pred_check
          %p359 = pneg %p49
        $region58: #{tpu_custom_call.1} parent=55 // pred_check_branch
          %361 = sbr.rel (%p359) target = $region60
        $region59: #{tpu_custom_call.1} parent=55 // pred_region
          %362 = dma.done %s355, 256
        $region60: #{tpu_custom_call.1} parent=55 // pred_fallthru
          _
        // Predicated region
        $region61: #{tpu_custom_call.1} parent=55 // pred_check
          %p363 = pneg %p91
        $region62: #{tpu_custom_call.1} parent=55 // pred_check_branch
          %365 = sbr.rel (%p363) target = $region64
        $region63: #{tpu_custom_call.1} parent=55 // pred_region
          %366 = dma.done [#allocation7], 2048
        $region64: #{tpu_custom_call.1} parent=55 // pred_fallthru
          _
        // Predicated region
        $region65: #{tpu_custom_call.1} parent=55 // pred_check
          %p367 = pneg %p112
        $region66: #{tpu_custom_call.1} parent=55 // pred_check_branch
          %369 = sbr.rel (%p367) target = $region68
        $region67: #{tpu_custom_call.1} parent=55 // pred_region
          %370 = dma.done [#allocation7], 18432
        $region68: #{tpu_custom_call.1} parent=55 // pred_fallthru
          _
        // Predicated region
        $region69: #{tpu_custom_call.1} parent=55 // pred_check
          %p371 = pneg %p133
        $region70: #{tpu_custom_call.1} parent=55 // pred_check_branch
          %373 = sbr.rel (%p371) target = $region72
        $region71: #{tpu_custom_call.1} parent=55 // pred_region
          %374 = dma.done [#allocation10], 6144
        $region72: #{tpu_custom_call.1} parent=55 // pred_fallthru
          _
        // Predicated region
        $region73: #{tpu_custom_call.1} parent=55 // pred_check
          %p375 = pneg %p154
        $region74: #{tpu_custom_call.1} parent=55 // pred_check_branch
          %377 = sbr.rel (%p375) target = $region76
        $region75: #{tpu_custom_call.1} parent=55 // pred_region
          %378 = dma.done [#allocation10], 2048
        $region76: #{tpu_custom_call.1} parent=55 // pred_fallthru
          _
        %s379 = sand.u32 %s36, 1
        %s380 = scalar_lea.sflag [#allocation4], %s379
        %s381 = sand.u32 %s36, 1
        %s382 = smul.addr %s381, 16
        %s383 = scalar_lea.vmem [#allocation3], %s382
        %p384 = pneg %p49
        %p385 = pneg %p46
        %p386 = pneg %p70
        %p387 = pneg %p67
        %p388 = pneg %p91
        %p389 = pneg %p88
        %p390 = pneg %p112
        %p391 = pneg %p109
        %p392 = pneg %p133
        %p393 = pneg %p130
        %p394 = pneg %p154
        %p395 = pneg %p151
        %p396 = pneg %p175
        %p397 = pneg %p172
        %p398 = pneg %p196
        %p399 = pneg %p193
        %p400 = pneg %p217
        %p401 = pneg %p214
        %p402 = pneg %p243
        %p403 = pneg %p240
        %s404 = sand.u32 %s230, 1
        %s405 = scalar_lea.sflag [#allocation5], %s404
        %s406 = sand.u32 %s230, 1
        %s407 = smul.addr %s406, 16
        %s408 = scalar_lea.vmem [#allocation12], %s407
        %v409 = vld [vmem:[%s358] sm:$0xff]
        %v410 = vld [vmem:[%s358 + $0x8] sm:$0xff]
        %v411 = vld [vmem:[%s1] sm:$0xff]
        %v412 = vld [vmem:[%s1 + $0x8] sm:$0xff]
        %v413 = vld [vmem:[%s1 + $0x10] sm:$0xff]
        %v414 = vld [vmem:[%s1 + $0x18] sm:$0xff]
        %v415 = vld [vmem:[%s1 + $0x20] sm:$0xff]
        %v416 = vld [vmem:[%s1 + $0x28] sm:$0xff]
        %v417 = vld [vmem:[%s1 + $0x30] sm:$0xff]
        %v418 = vld [vmem:[%s1 + $0x38] sm:$0xff]
        %v419 = vld [vmem:[%s1 + $0x40] sm:$0xff]
        %v420 = vld [vmem:[%s1 + $0x48] sm:$0xff]
        %v421 = vld [vmem:[%s1 + $0x50] sm:$0xff]
        %v422 = vld [vmem:[%s1 + $0x58] sm:$0xff]
        %v423 = vld [vmem:[%s1 + $0x60] sm:$0xff]
        %v424 = vld [vmem:[%s1 + $0x68] sm:$0xff]
        %v425 = vld [vmem:[%s1 + $0x70] sm:$0xff]
        %v426 = vld [vmem:[%s1 + $0x78] sm:$0xff]
        %427 = vmatprep.subr.mxu0 0.0
        %428 = vmatpush1.msra.mxu0 %v426
        %429 = vmatprep.subr.mxu0 0.0
        %430 = vmatpush1.msra.mxu0 %v425
        %431 = vmatprep.subr.mxu0 0.0
        %432 = vmatpush1.msra.mxu0 %v424
        %433 = vmatprep.subr.mxu0 0.0
        %434 = vmatpush1.msra.mxu0 %v423
        %435 = vmatprep.subr.mxu0 0.0
        %436 = vmatpush1.msra.mxu0 %v422
        %437 = vmatprep.subr.mxu0 0.0
        %438 = vmatpush1.msra.mxu0 %v421
        %439 = vmatprep.subr.mxu0 0.0
        %440 = vmatpush1.msra.mxu0 %v420
        %441 = vmatprep.subr.mxu0 0.0
        %442 = vmatpush1.msra.mxu0 %v419
        %443 = vmatprep.subr.mxu0 0.0
        %444 = vmatpush1.msra.mxu0 %v418
        %445 = vmatprep.subr.mxu0 0.0
        %446 = vmatpush1.msra.mxu0 %v417
        %447 = vmatprep.subr.mxu0 0.0
        %448 = vmatpush1.msra.mxu0 %v416
        %449 = vmatprep.subr.mxu0 0.0
        %450 = vmatpush1.msra.mxu0 %v415
        %451 = vmatprep.subr.mxu0 0.0
        %452 = vmatpush1.msra.mxu0 %v414
        %453 = vmatprep.subr.mxu0 0.0
        %454 = vmatpush1.msra.mxu0 %v413
        %455 = vmatprep.subr.mxu0 0.0
        %456 = vmatpush1.msra.mxu0 %v412
        %457 = vmatprep.subr.mxu0 0.0
        %458 = vmatpush1.msra.mxu0 %v411
        %459 = vmatprep.subr.mxu0 0.0
        %460 = vmatpush2.msra.mxu0 0.0
        %461 = vmatprep.subr.mxu0 0.0
        %462 = vmatpush2.msra.mxu0 0.0
        %463 = vmatprep.subr.mxu0 0.0
        %464 = vmatpush2.msra.mxu0 0.0
        %465 = vmatprep.subr.mxu0 0.0
        %466 = vmatpush2.msra.mxu0 0.0
        %467 = vmatprep.subr.mxu0 0.0
        %468 = vmatpush2.msra.mxu0 0.0
        %469 = vmatprep.subr.mxu0 0.0
        %470 = vmatpush2.msra.mxu0 0.0
        %471 = vmatprep.subr.mxu0 0.0
        %472 = vmatpush2.msra.mxu0 0.0
        %473 = vmatprep.subr.mxu0 0.0
        %474 = vmatpush2.msra.mxu0 0.0
        %475 = vmatprep.subr.mxu0 0.0
        %476 = vmatpush2.msra.mxu0 0.0
        %477 = vmatprep.subr.mxu0 0.0
        %478 = vmatpush2.msra.mxu0 0.0
        %479 = vmatprep.subr.mxu0 0.0
        %480 = vmatpush2.msra.mxu0 0.0
        %481 = vmatprep.subr.mxu0 0.0
        %482 = vmatpush2.msra.mxu0 0.0
        %483 = vmatprep.subr.mxu0 0.0
        %484 = vmatpush2.msra.mxu0 0.0
        %485 = vmatprep.subr.mxu0 0.0
        %486 = vmatpush2.msra.mxu0 0.0
        %487 = vmatprep.subr.mxu0 0.0
        %488 = vmatpush2.msra.mxu0 0.0
        %489 = vmatprep.subr.mxu0 0.0
        %490 = vmatpush2.msra.mxu0 0.0
        %491 = vmatprep.mubr.f32.mxu0 0.0
        %492 = vmatmul.mubr.f32.gmra.mxu0 %v409
        %v493 = vpop.f32.mrf.mxu0
        %v494 = vadd.f32 0.0, %v493
        %v495 = vpop.f32.mrf.mxu0
        %496 = vmatprep.mubr.f32.mxu0 0.0
        %497 = vmatmul.mubr.f32.gmra.mxu0 %v410
        %v498 = vpop.f32.mrf.mxu0
        %v499 = vadd.f32 0.0, %v498
        %v500 = vpop.f32.mrf.mxu0
        %501 = vdwg.mxu0
        %vm502 = vcmp.ge.f32.partialorder %v494, 0.0
        %vm503 = vcmp.ge.f32.partialorder %v499, 0.0
        %v504 = vmul.f32 %v494, 0.2
        %v505 = vmul.f32 %v499, 0.2
        %v506 = vsel %vm502, %v494, %v504
        %v507 = vsel %vm503, %v499, %v505
        %508 = vst [vmem:[#allocation2] sm:$0x1] 0.0
        %509 = vst [vmem:[#allocation2 + $0x11] sm:$0x1] 0.0
        %510 = vst [vmem:[#allocation2 + $0x1] sm:$0xff] %v506
        %511 = vst [vmem:[#allocation2 + $0x9] sm:$0xff] %v507
        %v512 = vld [vmem:[#allocation2] sm:$0xff]
        %v513 = vld [vmem:[#allocation2 + $0x8] sm:$0xff]
        %v514 = vld [vmem:[#allocation2 + $0x2] sm:$0xff]
        %v515 = vld [vmem:[#allocation2 + $0xa] sm:$0xff]
        %v516 = vld [vmem:[#allocation8] sm:$0xff]
        %v517 = vld [vmem:[#allocation8 + $0x8] sm:$0xff]
        %v518 = vld [vmem:[#allocation8 + $0x10] sm:$0xff]
        %v519 = vld [vmem:[#allocation8 + $0x18] sm:$0xff]
        %v520 = vld [vmem:[#allocation8 + $0x20] sm:$0xff]
        %v521 = vld [vmem:[#allocation8 + $0x28] sm:$0xff]
        %v522 = vld [vmem:[#allocation8 + $0x30] sm:$0xff]
        %v523 = vld [vmem:[#allocation8 + $0x38] sm:$0xff]
        %v524 = vld [vmem:[#allocation8 + $0x40] sm:$0xff]
        %v525 = vld [vmem:[#allocation8 + $0x48] sm:$0xff]
        %v526 = vld [vmem:[#allocation8 + $0x50] sm:$0xff]
        %v527 = vld [vmem:[#allocation8 + $0x58] sm:$0xff]
        %v528 = vld [vmem:[#allocation8 + $0x60] sm:$0xff]
        %v529 = vld [vmem:[#allocation8 + $0x68] sm:$0xff]
        %v530 = vld [vmem:[#allocation8 + $0x70] sm:$0xff]
        %v531 = vld [vmem:[#allocation8 + $0x78] sm:$0xff]
        %v532 = vld [vmem:[#allocation8 + $0x80] sm:$0xff]
        %v533 = vld [vmem:[#allocation8 + $0x88] sm:$0xff]
        %v534 = vld [vmem:[#allocation8 + $0x90] sm:$0xff]
        %v535 = vld [vmem:[#allocation8 + $0x98] sm:$0xff]
        %v536 = vld [vmem:[#allocation8 + $0xa0] sm:$0xff]
        %v537 = vld [vmem:[#allocation8 + $0xa8] sm:$0xff]
        %v538 = vld [vmem:[#allocation8 + $0xb0] sm:$0xff]
        %v539 = vld [vmem:[#allocation8 + $0xb8] sm:$0xff]
        %v540 = vld [vmem:[#allocation8 + $0xc0] sm:$0xff]
        %v541 = vld [vmem:[#allocation8 + $0xc8] sm:$0xff]
        %v542 = vld [vmem:[#allocation8 + $0xd0] sm:$0xff]
        %v543 = vld [vmem:[#allocation8 + $0xd8] sm:$0xff]
        %v544 = vld [vmem:[#allocation8 + $0xe0] sm:$0xff]
        %v545 = vld [vmem:[#allocation8 + $0xe8] sm:$0xff]
        %v546 = vld [vmem:[#allocation8 + $0xf0] sm:$0xff]
        %v547 = vld [vmem:[#allocation8 + $0xf8] sm:$0xff]
        %v548 = vld [vmem:[#allocation8 + $0x100] sm:$0xff]
        %v549 = vld [vmem:[#allocation8 + $0x108] sm:$0xff]
        %v550 = vld [vmem:[#allocation8 + $0x110] sm:$0xff]
        %v551 = vld [vmem:[#allocation8 + $0x118] sm:$0xff]
        %v552 = vld [vmem:[#allocation8 + $0x120] sm:$0xff]
        %v553 = vld [vmem:[#allocation8 + $0x128] sm:$0xff]
        %v554 = vld [vmem:[#allocation8 + $0x130] sm:$0xff]
        %v555 = vld [vmem:[#allocation8 + $0x138] sm:$0xff]
        %v556 = vld [vmem:[#allocation8 + $0x140] sm:$0xff]
        %v557 = vld [vmem:[#allocation8 + $0x148] sm:$0xff]
        %v558 = vld [vmem:[#allocation8 + $0x150] sm:$0xff]
        %v559 = vld [vmem:[#allocation8 + $0x158] sm:$0xff]
        %v560 = vld [vmem:[#allocation8 + $0x160] sm:$0xff]
        %v561 = vld [vmem:[#allocation8 + $0x168] sm:$0xff]
        %v562 = vld [vmem:[#allocation8 + $0x170] sm:$0xff]
        %v563 = vld [vmem:[#allocation8 + $0x178] sm:$0xff]
        %v564 = vld [vmem:[#allocation8 + $0x180] sm:$0xff]
        %v565 = vld [vmem:[#allocation8 + $0x188] sm:$0xff]
        %v566 = vld [vmem:[#allocation8 + $0x190] sm:$0xff]
        %v567 = vld [vmem:[#allocation8 + $0x198] sm:$0xff]
        %v568 = vld [vmem:[#allocation8 + $0x1a0] sm:$0xff]
        %v569 = vld [vmem:[#allocation8 + $0x1a8] sm:$0xff]
        %v570 = vld [vmem:[#allocation8 + $0x1b0] sm:$0xff]
        %v571 = vld [vmem:[#allocation8 + $0x1b8] sm:$0xff]
        %v572 = vld [vmem:[#allocation8 + $0x1c0] sm:$0xff]
        %v573 = vld [vmem:[#allocation8 + $0x1c8] sm:$0xff]
        %v574 = vld [vmem:[#allocation8 + $0x1d0] sm:$0xff]
        %v575 = vld [vmem:[#allocation8 + $0x1d8] sm:$0xff]
        %v576 = vld [vmem:[#allocation8 + $0x1e0] sm:$0xff]
        %v577 = vld [vmem:[#allocation8 + $0x1e8] sm:$0xff]
        %v578 = vld [vmem:[#allocation8 + $0x1f0] sm:$0xff]
        %v579 = vld [vmem:[#allocation8 + $0x1f8] sm:$0xff]
        %v580 = vld [vmem:[#allocation8 + $0x200] sm:$0xff]
        %v581 = vld [vmem:[#allocation8 + $0x208] sm:$0xff]
        %v582 = vld [vmem:[#allocation8 + $0x210] sm:$0xff]
        %v583 = vld [vmem:[#allocation8 + $0x218] sm:$0xff]
        %v584 = vld [vmem:[#allocation8 + $0x220] sm:$0xff]
        %v585 = vld [vmem:[#allocation8 + $0x228] sm:$0xff]
        %v586 = vld [vmem:[#allocation8 + $0x230] sm:$0xff]
        %v587 = vld [vmem:[#allocation8 + $0x238] sm:$0xff]
        %v588 = vld [vmem:[#allocation8 + $0x240] sm:$0xff]
        %v589 = vld [vmem:[#allocation8 + $0x248] sm:$0xff]
        %v590 = vld [vmem:[#allocation8 + $0x250] sm:$0xff]
        %v591 = vld [vmem:[#allocation8 + $0x258] sm:$0xff]
        %v592 = vld [vmem:[#allocation8 + $0x260] sm:$0xff]
        %v593 = vld [vmem:[#allocation8 + $0x268] sm:$0xff]
        %v594 = vld [vmem:[#allocation8 + $0x270] sm:$0xff]
        %v595 = vld [vmem:[#allocation8 + $0x278] sm:$0xff]
        %v596 = vld [vmem:[#allocation8 + $0x280] sm:$0xff]
        %v597 = vld [vmem:[#allocation8 + $0x288] sm:$0xff]
        %v598 = vld [vmem:[#allocation8 + $0x290] sm:$0xff]
        %v599 = vld [vmem:[#allocation8 + $0x298] sm:$0xff]
        %v600 = vld [vmem:[#allocation8 + $0x2a0] sm:$0xff]
        %v601 = vld [vmem:[#allocation8 + $0x2a8] sm:$0xff]
        %v602 = vld [vmem:[#allocation8 + $0x2b0] sm:$0xff]
        %v603 = vld [vmem:[#allocation8 + $0x2b8] sm:$0xff]
        %v604 = vld [vmem:[#allocation8 + $0x2c0] sm:$0xff]
        %v605 = vld [vmem:[#allocation8 + $0x2c8] sm:$0xff]
        %v606 = vld [vmem:[#allocation8 + $0x2d0] sm:$0xff]
        %v607 = vld [vmem:[#allocation8 + $0x2d8] sm:$0xff]
        %v608 = vld [vmem:[#allocation8 + $0x2e0] sm:$0xff]
        %v609 = vld [vmem:[#allocation8 + $0x2e8] sm:$0xff]
        %v610 = vld [vmem:[#allocation8 + $0x2f0] sm:$0xff]
        %v611 = vld [vmem:[#allocation8 + $0x2f8] sm:$0xff]
        %v612 = vld [vmem:[#allocation8 + $0x300] sm:$0xff]
        %v613 = vld [vmem:[#allocation8 + $0x308] sm:$0xff]
        %v614 = vld [vmem:[#allocation8 + $0x310] sm:$0xff]
        %v615 = vld [vmem:[#allocation8 + $0x318] sm:$0xff]
        %v616 = vld [vmem:[#allocation8 + $0x320] sm:$0xff]
        %v617 = vld [vmem:[#allocation8 + $0x328] sm:$0xff]
        %v618 = vld [vmem:[#allocation8 + $0x330] sm:$0xff]
        %v619 = vld [vmem:[#allocation8 + $0x338] sm:$0xff]
        %v620 = vld [vmem:[#allocation8 + $0x340] sm:$0xff]
        %v621 = vld [vmem:[#allocation8 + $0x348] sm:$0xff]
        %v622 = vld [vmem:[#allocation8 + $0x350] sm:$0xff]
        %v623 = vld [vmem:[#allocation8 + $0x358] sm:$0xff]
        %v624 = vld [vmem:[#allocation8 + $0x360] sm:$0xff]
        %v625 = vld [vmem:[#allocation8 + $0x368] sm:$0xff]
        %v626 = vld [vmem:[#allocation8 + $0x370] sm:$0xff]
        %v627 = vld [vmem:[#allocation8 + $0x378] sm:$0xff]
        %v628 = vld [vmem:[#allocation8 + $0x380] sm:$0xff]
        %v629 = vld [vmem:[#allocation8 + $0x388] sm:$0xff]
        %v630 = vld [vmem:[#allocation8 + $0x390] sm:$0xff]
        %v631 = vld [vmem:[#allocation8 + $0x398] sm:$0xff]
        %v632 = vld [vmem:[#allocation8 + $0x3a0] sm:$0xff]
        %v633 = vld [vmem:[#allocation8 + $0x3a8] sm:$0xff]
        %v634 = vld [vmem:[#allocation8 + $0x3b0] sm:$0xff]
        %v635 = vld [vmem:[#allocation8 + $0x3b8] sm:$0xff]
        %v636 = vld [vmem:[#allocation8 + $0x3c0] sm:$0xff]
        %v637 = vld [vmem:[#allocation8 + $0x3c8] sm:$0xff]
        %v638 = vld [vmem:[#allocation8 + $0x3d0] sm:$0xff]
        %v639 = vld [vmem:[#allocation8 + $0x3d8] sm:$0xff]
        %v640 = vld [vmem:[#allocation8 + $0x3e0] sm:$0xff]
        %v641 = vld [vmem:[#allocation8 + $0x3e8] sm:$0xff]
        %v642 = vld [vmem:[#allocation8 + $0x3f0] sm:$0xff]
        %v643 = vld [vmem:[#allocation8 + $0x3f8] sm:$0xff]
        %v644 = vld [vmem:[#allocation8 + $0x400] sm:$0xff]
        %v645 = vld [vmem:[#allocation8 + $0x408] sm:$0xff]
        %v646 = vld [vmem:[#allocation8 + $0x410] sm:$0xff]
        %v647 = vld [vmem:[#allocation8 + $0x418] sm:$0xff]
        %v648 = vld [vmem:[#allocation8 + $0x420] sm:$0xff]
        %v649 = vld [vmem:[#allocation8 + $0x428] sm:$0xff]
        %v650 = vld [vmem:[#allocation8 + $0x430] sm:$0xff]
        %v651 = vld [vmem:[#allocation8 + $0x438] sm:$0xff]
        %v652 = vld [vmem:[#allocation8 + $0x440] sm:$0xff]
        %v653 = vld [vmem:[#allocation8 + $0x448] sm:$0xff]
        %v654 = vld [vmem:[#allocation8 + $0x450] sm:$0xff]
        %v655 = vld [vmem:[#allocation8 + $0x458] sm:$0xff]
        %v656 = vld [vmem:[#allocation8 + $0x460] sm:$0xff]
        %v657 = vld [vmem:[#allocation8 + $0x468] sm:$0xff]
        %v658 = vld [vmem:[#allocation8 + $0x470] sm:$0xff]
        %v659 = vld [vmem:[#allocation8 + $0x478] sm:$0xff]
        %660 = vmatprep.subr.mxu0 %v562
        %661 = vmatpush1.msra.mxu0 %v561
        %662 = vmatprep.subr.mxu0 %v559
        %663 = vmatpush1.msra.mxu0 %v558
        %664 = vmatprep.subr.mxu0 %v556
        %665 = vmatpush1.msra.mxu0 %v555
        %666 = vmatprep.subr.mxu0 %v553
        %667 = vmatpush1.msra.mxu0 %v552
        %668 = vmatprep.subr.mxu0 %v550
        %669 = vmatpush1.msra.mxu0 %v549
        %670 = vmatprep.subr.mxu0 %v547
        %671 = vmatpush1.msra.mxu0 %v546
        %672 = vmatprep.subr.mxu0 %v544
        %673 = vmatpush1.msra.mxu0 %v543
        %674 = vmatprep.subr.mxu0 %v541
        %675 = vmatpush1.msra.mxu0 %v540
        %676 = vmatprep.subr.mxu0 %v538
        %677 = vmatpush1.msra.mxu0 %v537
        %678 = vmatprep.subr.mxu0 %v535
        %679 = vmatpush1.msra.mxu0 %v534
        %680 = vmatprep.subr.mxu0 %v532
        %681 = vmatpush1.msra.mxu0 %v531
        %682 = vmatprep.subr.mxu0 %v529
        %683 = vmatpush1.msra.mxu0 %v528
        %684 = vmatprep.subr.mxu0 %v526
        %685 = vmatpush1.msra.mxu0 %v525
        %686 = vmatprep.subr.mxu0 %v523
        %687 = vmatpush1.msra.mxu0 %v522
        %688 = vmatprep.subr.mxu0 %v520
        %689 = vmatpush1.msra.mxu0 %v519
        %690 = vmatprep.subr.mxu0 %v517
        %691 = vmatpush1.msra.mxu0 %v516
        %692 = vmatprep.subr.mxu0 %v610
        %693 = vmatpush2.msra.mxu0 %v609
        %694 = vmatprep.subr.mxu0 %v607
        %695 = vmatpush2.msra.mxu0 %v606
        %696 = vmatprep.subr.mxu0 %v604
        %697 = vmatpush2.msra.mxu0 %v603
        %698 = vmatprep.subr.mxu0 %v601
        %699 = vmatpush2.msra.mxu0 %v600
        %700 = vmatprep.subr.mxu0 %v598
        %701 = vmatpush2.msra.mxu0 %v597
        %702 = vmatprep.subr.mxu0 %v595
        %703 = vmatpush2.msra.mxu0 %v594
        %704 = vmatprep.subr.mxu0 %v592
        %705 = vmatpush2.msra.mxu0 %v591
        %706 = vmatprep.subr.mxu0 %v589
        %707 = vmatpush2.msra.mxu0 %v588
        %708 = vmatprep.subr.mxu0 %v586
        %709 = vmatpush2.msra.mxu0 %v585
        %710 = vmatprep.subr.mxu0 %v583
        %711 = vmatpush2.msra.mxu0 %v582
        %712 = vmatprep.subr.mxu0 %v580
        %713 = vmatpush2.msra.mxu0 %v579
        %714 = vmatprep.subr.mxu0 %v577
        %715 = vmatpush2.msra.mxu0 %v576
        %716 = vmatprep.subr.mxu0 %v574
        %717 = vmatpush2.msra.mxu0 %v573
        %718 = vmatprep.subr.mxu0 %v571
        %719 = vmatpush2.msra.mxu0 %v570
        %720 = vmatprep.subr.mxu0 %v568
        %721 = vmatpush2.msra.mxu0 %v567
        %722 = vmatprep.subr.mxu0 %v565
        %723 = vmatpush2.msra.mxu0 %v564
        %724 = vmatprep.mubr.f32.mxu0 %v506
        %725 = vmatmul.mubr.f32.gmra.mxu0 %v512
        %v726 = vpop.f32.mrf.mxu0
        %v727 = vadd.f32 0.0, %v726
        %v728 = vpop.f32.mrf.mxu0
        %v729 = vadd.f32 0.0, %v728
        %730 = vmatprep.mubr.f32.mxu0 %v507
        %731 = vmatmul.mubr.f32.gmra.mxu0 %v513
        %v732 = vpop.f32.mrf.mxu0
        %v733 = vadd.f32 0.0, %v732
        %v734 = vpop.f32.mrf.mxu0
        %v735 = vadd.f32 0.0, %v734
        %736 = vdwg.mxu0
        %737 = vmatprep.subr.mxu0 %v658
        %738 = vmatpush1.msra.mxu0 %v657
        %739 = vmatprep.subr.mxu0 %v655
        %740 = vmatpush1.msra.mxu0 %v654
        %741 = vmatprep.subr.mxu0 %v652
        %742 = vmatpush1.msra.mxu0 %v651
        %743 = vmatprep.subr.mxu0 %v649
        %744 = vmatpush1.msra.mxu0 %v648
        %745 = vmatprep.subr.mxu0 %v646
        %746 = vmatpush1.msra.mxu0 %v645
        %747 = vmatprep.subr.mxu0 %v643
        %748 = vmatpush1.msra.mxu0 %v642
        %749 = vmatprep.subr.mxu0 %v640
        %750 = vmatpush1.msra.mxu0 %v639
        %751 = vmatprep.subr.mxu0 %v637
        %752 = vmatpush1.msra.mxu0 %v636
        %753 = vmatprep.subr.mxu0 %v634
        %754 = vmatpush1.msra.mxu0 %v633
        %755 = vmatprep.subr.mxu0 %v631
        %756 = vmatpush1.msra.mxu0 %v630
        %757 = vmatprep.subr.mxu0 %v628
        %758 = vmatpush1.msra.mxu0 %v627
        %759 = vmatprep.subr.mxu0 %v625
        %760 = vmatpush1.msra.mxu0 %v624
        %761 = vmatprep.subr.mxu0 %v622
        %762 = vmatpush1.msra.mxu0 %v621
        %763 = vmatprep.subr.mxu0 %v619
        %764 = vmatpush1.msra.mxu0 %v618
        %765 = vmatprep.subr.mxu0 %v616
        %766 = vmatpush1.msra.mxu0 %v615
        %767 = vmatprep.subr.mxu0 %v613
        %768 = vmatpush1.msra.mxu0 %v612
        %769 = vmatprep.subr.mxu0 0.0
        %770 = vmatpush2.msra.mxu0 0.0
        %771 = vmatprep.subr.mxu0 0.0
        %772 = vmatpush2.msra.mxu0 0.0
        %773 = vmatprep.subr.mxu0 0.0
        %774 = vmatpush2.msra.mxu0 0.0
        %775 = vmatprep.subr.mxu0 0.0
        %776 = vmatpush2.msra.mxu0 0.0
        %777 = vmatprep.subr.mxu0 0.0
        %778 = vmatpush2.msra.mxu0 0.0
        %779 = vmatprep.subr.mxu0 0.0
        %780 = vmatpush2.msra.mxu0 0.0
        %781 = vmatprep.subr.mxu0 0.0
        %782 = vmatpush2.msra.mxu0 0.0
        %783 = vmatprep.subr.mxu0 0.0
        %784 = vmatpush2.msra.mxu0 0.0
        %785 = vmatprep.subr.mxu0 0.0
        %786 = vmatpush2.msra.mxu0 0.0
        %787 = vmatprep.subr.mxu0 0.0
        %788 = vmatpush2.msra.mxu0 0.0
        %789 = vmatprep.subr.mxu0 0.0
        %790 = vmatpush2.msra.mxu0 0.0
        %791 = vmatprep.subr.mxu0 0.0
        %792 = vmatpush2.msra.mxu0 0.0
        %793 = vmatprep.subr.mxu0 0.0
        %794 = vmatpush2.msra.mxu0 0.0
        %795 = vmatprep.subr.mxu0 0.0
        %796 = vmatpush2.msra.mxu0 0.0
        %797 = vmatprep.subr.mxu0 0.0
        %798 = vmatpush2.msra.mxu0 0.0
        %799 = vmatprep.subr.mxu0 0.0
        %800 = vmatpush2.msra.mxu0 0.0
        %801 = vmatprep.mubr.f32.mxu0 0.0
        %802 = vmatmul.mubr.f32.gmra.mxu0 %v514
        %v803 = vpop.f32.mrf.mxu0
        %v804 = vadd.f32 %v727, %v803
        %v805 = vpop.f32.mrf.mxu0
        %v806 = vadd.f32 %v729, %v805
        %807 = vmatprep.mubr.f32.mxu0 0.0
        %808 = vmatmul.mubr.f32.gmra.mxu0 %v515
        %v809 = vpop.f32.mrf.mxu0
        %v810 = vadd.f32 %v733, %v809
        %v811 = vpop.f32.mrf.mxu0
        %v812 = vadd.f32 %v735, %v811
        %813 = vdwg.mxu0
        %814 = vmatprep.subr.mxu0 0.0
        %815 = vmatpush1.msra.mxu0 %v563
        %816 = vmatprep.subr.mxu0 0.0
        %817 = vmatpush1.msra.mxu0 %v560
        %818 = vmatprep.subr.mxu0 0.0
        %819 = vmatpush1.msra.mxu0 %v557
        %820 = vmatprep.subr.mxu0 0.0
        %821 = vmatpush1.msra.mxu0 %v554
        %822 = vmatprep.subr.mxu0 0.0
        %823 = vmatpush1.msra.mxu0 %v551
        %824 = vmatprep.subr.mxu0 0.0
        %825 = vmatpush1.msra.mxu0 %v548
        %826 = vmatprep.subr.mxu0 0.0
        %827 = vmatpush1.msra.mxu0 %v545
        %828 = vmatprep.subr.mxu0 0.0
        %829 = vmatpush1.msra.mxu0 %v542
        %830 = vmatprep.subr.mxu0 0.0
        %831 = vmatpush1.msra.mxu0 %v539
        %832 = vmatprep.subr.mxu0 0.0
        %833 = vmatpush1.msra.mxu0 %v536
        %834 = vmatprep.subr.mxu0 0.0
        %835 = vmatpush1.msra.mxu0 %v533
        %836 = vmatprep.subr.mxu0 0.0
        %837 = vmatpush1.msra.mxu0 %v530
        %838 = vmatprep.subr.mxu0 0.0
        %839 = vmatpush1.msra.mxu0 %v527
        %840 = vmatprep.subr.mxu0 0.0
        %841 = vmatpush1.msra.mxu0 %v524
        %842 = vmatprep.subr.mxu0 0.0
        %843 = vmatpush1.msra.mxu0 %v521
        %844 = vmatprep.subr.mxu0 0.0
        %845 = vmatpush1.msra.mxu0 %v518
        %846 = vmatprep.subr.mxu0 0.0
        %847 = vmatpush2.msra.mxu0 %v611
        %848 = vmatprep.subr.mxu0 0.0
        %849 = vmatpush2.msra.mxu0 %v608
        %850 = vmatprep.subr.mxu0 0.0
        %851 = vmatpush2.msra.mxu0 %v605
        %852 = vmatprep.subr.mxu0 0.0
        %853 = vmatpush2.msra.mxu0 %v602
        %854 = vmatprep.subr.mxu0 0.0
        %855 = vmatpush2.msra.mxu0 %v599
        %856 = vmatprep.subr.mxu0 0.0
        %857 = vmatpush2.msra.mxu0 %v596
        %858 = vmatprep.subr.mxu0 0.0
        %859 = vmatpush2.msra.mxu0 %v593
        %860 = vmatprep.subr.mxu0 0.0
        %861 = vmatpush2.msra.mxu0 %v590
        %862 = vmatprep.subr.mxu0 0.0
        %863 = vmatpush2.msra.mxu0 %v587
        %864 = vmatprep.subr.mxu0 0.0
        %865 = vmatpush2.msra.mxu0 %v584
        %866 = vmatprep.subr.mxu0 0.0
        %867 = vmatpush2.msra.mxu0 %v581
        %868 = vmatprep.subr.mxu0 0.0
        %869 = vmatpush2.msra.mxu0 %v578
        %870 = vmatprep.subr.mxu0 0.0
        %871 = vmatpush2.msra.mxu0 %v575
        %872 = vmatprep.subr.mxu0 0.0
        %873 = vmatpush2.msra.mxu0 %v572
        %874 = vmatprep.subr.mxu0 0.0
        %875 = vmatpush2.msra.mxu0 %v569
        %876 = vmatprep.subr.mxu0 0.0
        %877 = vmatpush2.msra.mxu0 %v566
        %878 = vmatprep.mubr.f32.mxu0 %v506
        %879 = vmatmul.mubr.f32.gmra.mxu0 %v512
        %v880 = vpop.f32.mrf.mxu0
        %v881 = vadd.f32 0.0, %v880
        %v882 = vpop.f32.mrf.mxu0
        %883 = vmatprep.mubr.f32.mxu0 %v507
        %884 = vmatmul.mubr.f32.gmra.mxu0 %v513
        %v885 = vpop.f32.mrf.mxu0
        %v886 = vadd.f32 0.0, %v885
        %v887 = vpop.f32.mrf.mxu0
        %888 = vdwg.mxu0
        %889 = vmatprep.subr.mxu0 0.0
        %890 = vmatpush1.msra.mxu0 %v659
        %891 = vmatprep.subr.mxu0 0.0
        %892 = vmatpush1.msra.mxu0 %v656
        %893 = vmatprep.subr.mxu0 0.0
        %894 = vmatpush1.msra.mxu0 %v653
        %895 = vmatprep.subr.mxu0 0.0
        %896 = vmatpush1.msra.mxu0 %v650
        %897 = vmatprep.subr.mxu0 0.0
        %898 = vmatpush1.msra.mxu0 %v647
        %899 = vmatprep.subr.mxu0 0.0
        %900 = vmatpush1.msra.mxu0 %v644
        %901 = vmatprep.subr.mxu0 0.0
        %902 = vmatpush1.msra.mxu0 %v641
        %903 = vmatprep.subr.mxu0 0.0
        %904 = vmatpush1.msra.mxu0 %v638
        %905 = vmatprep.subr.mxu0 0.0
        %906 = vmatpush1.msra.mxu0 %v635
        %907 = vmatprep.subr.mxu0 0.0
        %908 = vmatpush1.msra.mxu0 %v632
        %909 = vmatprep.subr.mxu0 0.0
        %910 = vmatpush1.msra.mxu0 %v629
        %911 = vmatprep.subr.mxu0 0.0
        %912 = vmatpush1.msra.mxu0 %v626
        %913 = vmatprep.subr.mxu0 0.0
        %914 = vmatpush1.msra.mxu0 %v623
        %915 = vmatprep.subr.mxu0 0.0
        %916 = vmatpush1.msra.mxu0 %v620
        %917 = vmatprep.subr.mxu0 0.0
        %918 = vmatpush1.msra.mxu0 %v617
        %919 = vmatprep.subr.mxu0 0.0
        %920 = vmatpush1.msra.mxu0 %v614
        %921 = vmatprep.subr.mxu0 0.0
        %922 = vmatpush2.msra.mxu0 0.0
        %923 = vmatprep.subr.mxu0 0.0
        %924 = vmatpush2.msra.mxu0 0.0
        %925 = vmatprep.subr.mxu0 0.0
        %926 = vmatpush2.msra.mxu0 0.0
        %927 = vmatprep.subr.mxu0 0.0
        %928 = vmatpush2.msra.mxu0 0.0
        %929 = vmatprep.subr.mxu0 0.0
        %930 = vmatpush2.msra.mxu0 0.0
        %931 = vmatprep.subr.mxu0 0.0
        %932 = vmatpush2.msra.mxu0 0.0
        %933 = vmatprep.subr.mxu0 0.0
        %934 = vmatpush2.msra.mxu0 0.0
        %935 = vmatprep.subr.mxu0 0.0
        %936 = vmatpush2.msra.mxu0 0.0
        %937 = vmatprep.subr.mxu0 0.0
        %938 = vmatpush2.msra.mxu0 0.0
        %939 = vmatprep.subr.mxu0 0.0
        %940 = vmatpush2.msra.mxu0 0.0
        %941 = vmatprep.subr.mxu0 0.0
        %942 = vmatpush2.msra.mxu0 0.0
        %943 = vmatprep.subr.mxu0 0.0
        %944 = vmatpush2.msra.mxu0 0.0
        %945 = vmatprep.subr.mxu0 0.0
        %946 = vmatpush2.msra.mxu0 0.0
        %947 = vmatprep.subr.mxu0 0.0
        %948 = vmatpush2.msra.mxu0 0.0
        %949 = vmatprep.subr.mxu0 0.0
        %950 = vmatpush2.msra.mxu0 0.0
        %951 = vmatprep.subr.mxu0 0.0
        %952 = vmatpush2.msra.mxu0 0.0
        %953 = vmatprep.mubr.f32.mxu0 0.0
        %954 = vmatmul.mubr.f32.gmra.mxu0 %v514
        %v955 = vpop.f32.mrf.mxu0
        %v956 = vadd.f32 %v881, %v955
        %v957 = vpop.f32.mrf.mxu0
        %958 = vmatprep.mubr.f32.mxu0 0.0
        %959 = vmatmul.mubr.f32.gmra.mxu0 %v515
        %v960 = vpop.f32.mrf.mxu0
        %v961 = vadd.f32 %v886, %v960
        %v962 = vpop.f32.mrf.mxu0
        %963 = vdwg.mxu0
        %vm964 = vcmp.ge.f32.partialorder %v804, 0.0
        %vm965 = vcmp.ge.f32.partialorder %v810, 0.0
        %v966 = vmul.f32 %v804, 0.2
        %v967 = vmul.f32 %v810, 0.2
        %v968 = vsel %vm964, %v804, %v966
        %v969 = vsel %vm965, %v810, %v967
        %v970 = vld [vmem:[#allocation11] sm:$0xff]
        %v971 = vld [vmem:[#allocation11 + $0x8] sm:$0xff]
        %v972 = vld [vmem:[#allocation11 + $0x10] sm:$0xff]
        %v973 = vld [vmem:[#allocation11 + $0x18] sm:$0xff]
        %v974 = vld [vmem:[#allocation11 + $0x20] sm:$0xff]
        %v975 = vld [vmem:[#allocation11 + $0x28] sm:$0xff]
        %v976 = vld [vmem:[#allocation11 + $0x30] sm:$0xff]
        %v977 = vld [vmem:[#allocation11 + $0x38] sm:$0xff]
        %v978 = vld [vmem:[#allocation11 + $0x40] sm:$0xff]
        %v979 = vld [vmem:[#allocation11 + $0x48] sm:$0xff]
        %v980 = vld [vmem:[#allocation11 + $0x50] sm:$0xff]
        %v981 = vld [vmem:[#allocation11 + $0x58] sm:$0xff]
        %v982 = vld [vmem:[#allocation11 + $0x60] sm:$0xff]
        %v983 = vld [vmem:[#allocation11 + $0x68] sm:$0xff]
        %v984 = vld [vmem:[#allocation11 + $0x70] sm:$0xff]
        %v985 = vld [vmem:[#allocation11 + $0x78] sm:$0xff]
        %v986 = vld [vmem:[%s6] sm:$0x1]
        %v988 = vlaneseq
        %v989 = vshrl.u32 %v988, 7
        %v990 = vsub.s32 0, %v989
        %v991 = vrot.slane %v986, %v990
        %993 = vmatprep.subr.mxu0 0.0
        %994 = vmatpush1.msra.mxu0 %v985
        %995 = vmatprep.subr.mxu0 0.0
        %996 = vmatpush1.msra.mxu0 %v984
        %997 = vmatprep.subr.mxu0 0.0
        %998 = vmatpush1.msra.mxu0 %v983
        %999 = vmatprep.subr.mxu0 0.0
        %1000 = vmatpush1.msra.mxu0 %v982
        %1001 = vmatprep.subr.mxu0 0.0
        %1002 = vmatpush1.msra.mxu0 %v981
        %1003 = vmatprep.subr.mxu0 0.0
        %1004 = vmatpush1.msra.mxu0 %v980
        %1005 = vmatprep.subr.mxu0 0.0
        %1006 = vmatpush1.msra.mxu0 %v979
        %1007 = vmatprep.subr.mxu0 0.0
        %1008 = vmatpush1.msra.mxu0 %v978
        %1009 = vmatprep.subr.mxu0 0.0
        %1010 = vmatpush1.msra.mxu0 %v977
        %1011 = vmatprep.subr.mxu0 0.0
        %1012 = vmatpush1.msra.mxu0 %v976
        %1013 = vmatprep.subr.mxu0 0.0
        %1014 = vmatpush1.msra.mxu0 %v975
        %1015 = vmatprep.subr.mxu0 0.0
        %1016 = vmatpush1.msra.mxu0 %v974
        %1017 = vmatprep.subr.mxu0 0.0
        %1018 = vmatpush1.msra.mxu0 %v973
        %1019 = vmatprep.subr.mxu0 0.0
        %1020 = vmatpush1.msra.mxu0 %v972
        %1021 = vmatprep.subr.mxu0 0.0
        %1022 = vmatpush1.msra.mxu0 %v971
        %1023 = vmatprep.subr.mxu0 0.0
        %1024 = vmatpush1.msra.mxu0 %v970
        %1025 = vmatprep.subr.mxu0 0.0
        %1026 = vmatpush2.msra.mxu0 0.0
        %1027 = vmatprep.subr.mxu0 0.0
        %1028 = vmatpush2.msra.mxu0 0.0
        %1029 = vmatprep.subr.mxu0 0.0
        %1030 = vmatpush2.msra.mxu0 0.0
        %1031 = vmatprep.subr.mxu0 0.0
        %1032 = vmatpush2.msra.mxu0 0.0
        %1033 = vmatprep.subr.mxu0 0.0
        %1034 = vmatpush2.msra.mxu0 0.0
        %1035 = vmatprep.subr.mxu0 0.0
        %1036 = vmatpush2.msra.mxu0 0.0
        %1037 = vmatprep.subr.mxu0 0.0
        %1038 = vmatpush2.msra.mxu0 0.0
        %1039 = vmatprep.subr.mxu0 0.0
        %1040 = vmatpush2.msra.mxu0 0.0
        %1041 = vmatprep.subr.mxu0 0.0
        %1042 = vmatpush2.msra.mxu0 0.0
        %1043 = vmatprep.subr.mxu0 0.0
        %1044 = vmatpush2.msra.mxu0 0.0
        %1045 = vmatprep.subr.mxu0 0.0
        %1046 = vmatpush2.msra.mxu0 0.0
        %1047 = vmatprep.subr.mxu0 0.0
        %1048 = vmatpush2.msra.mxu0 0.0
        %1049 = vmatprep.subr.mxu0 0.0
        %1050 = vmatpush2.msra.mxu0 0.0
        %1051 = vmatprep.subr.mxu0 0.0
        %1052 = vmatpush2.msra.mxu0 0.0
        %1053 = vmatprep.subr.mxu0 0.0
        %1054 = vmatpush2.msra.mxu0 0.0
        %1055 = vmatprep.subr.mxu0 0.0
        %1056 = vmatpush2.msra.mxu0 0.0
        %1057 = vmatprep.mubr.f32.mxu0 0.0
        %1058 = vmatmul.mubr.f32.gmra.mxu0 %v968
        %v1059 = vpop.f32.mrf.mxu0
        %v1060 = vadd.f32 %v991, %v1059
        %v1061 = vpop.f32.mrf.mxu0
        %1062 = vmatprep.mubr.f32.mxu0 0.0
        %1063 = vmatmul.mubr.f32.gmra.mxu0 %v969
        %v1064 = vpop.f32.mrf.mxu0
        %v1065 = vadd.f32 %v991, %v1064
        %v1066 = vpop.f32.mrf.mxu0
        %1067 = vdwg.mxu0
        %v1068 = vxor.u32 %v1060, 2147483648
        %v1069 = vxor.u32 %v1065, 2147483648
        %v1070 = vmul.f32 %v1068, 1.442695
        %v1071 = vpow.pop %v1070
        %v1072 = vmul.f32 %v1069, 1.442695
        %v1073 = vpow.pop %v1072
        %v1074 = vadd.f32 %v1071, 1.0
        %v1075 = vadd.f32 %v1073, 1.0
        %v1076 = vrcp.pop %v1074
        %v1077 = vmul.f32 1.0, %v1076
        %v1078 = vrcp.pop %v1075
        %v1079 = vmul.f32 1.0, %v1078
        %v1080 = vmul.f32 %v806, %v1077
        %v1081 = vmul.f32 %v812, %v1079
        %1082 = vst [vmem:[#allocation2 + $0x1] sm:$0xff] %v1080
        %1083 = vst [vmem:[#allocation2 + $0x9] sm:$0xff] %v1081
        %v1084 = vld [vmem:[#allocation2] sm:$0xff]
        %v1085 = vld [vmem:[#allocation2 + $0x8] sm:$0xff]
        %v1086 = vld [vmem:[#allocation2 + $0x2] sm:$0xff]
        %v1087 = vld [vmem:[#allocation2 + $0xa] sm:$0xff]
        %v1088 = vld [vmem:[#allocation9] sm:$0xff]
        %v1089 = vld [vmem:[#allocation9 + $0x8] sm:$0xff]
        %v1090 = vld [vmem:[#allocation9 + $0x10] sm:$0xff]
        %v1091 = vld [vmem:[#allocation9 + $0x18] sm:$0xff]
        %v1092 = vld [vmem:[#allocation9 + $0x20] sm:$0xff]
        %v1093 = vld [vmem:[#allocation9 + $0x28] sm:$0xff]
        %v1094 = vld [vmem:[#allocation9 + $0x30] sm:$0xff]
        %v1095 = vld [vmem:[#allocation9 + $0x38] sm:$0xff]
        %v1096 = vld [vmem:[#allocation9 + $0x40] sm:$0xff]
        %v1097 = vld [vmem:[#allocation9 + $0x48] sm:$0xff]
        %v1098 = vld [vmem:[#allocation9 + $0x50] sm:$0xff]
        %v1099 = vld [vmem:[#allocation9 + $0x58] sm:$0xff]
        %v1100 = vld [vmem:[#allocation9 + $0x60] sm:$0xff]
        %v1101 = vld [vmem:[#allocation9 + $0x68] sm:$0xff]
        %v1102 = vld [vmem:[#allocation9 + $0x70] sm:$0xff]
        %v1103 = vld [vmem:[#allocation9 + $0x78] sm:$0xff]
        %v1104 = vld [vmem:[#allocation9 + $0x80] sm:$0xff]
        %v1105 = vld [vmem:[#allocation9 + $0x88] sm:$0xff]
        %v1106 = vld [vmem:[#allocation9 + $0x90] sm:$0xff]
        %v1107 = vld [vmem:[#allocation9 + $0x98] sm:$0xff]
        %v1108 = vld [vmem:[#allocation9 + $0xa0] sm:$0xff]
        %v1109 = vld [vmem:[#allocation9 + $0xa8] sm:$0xff]
        %v1110 = vld [vmem:[#allocation9 + $0xb0] sm:$0xff]
        %v1111 = vld [vmem:[#allocation9 + $0xb8] sm:$0xff]
        %v1112 = vld [vmem:[#allocation9 + $0xc0] sm:$0xff]
        %v1113 = vld [vmem:[#allocation9 + $0xc8] sm:$0xff]
        %v1114 = vld [vmem:[#allocation9 + $0xd0] sm:$0xff]
        %v1115 = vld [vmem:[#allocation9 + $0xd8] sm:$0xff]
        %v1116 = vld [vmem:[#allocation9 + $0xe0] sm:$0xff]
        %v1117 = vld [vmem:[#allocation9 + $0xe8] sm:$0xff]
        %v1118 = vld [vmem:[#allocation9 + $0xf0] sm:$0xff]
        %v1119 = vld [vmem:[#allocation9 + $0xf8] sm:$0xff]
        %v1120 = vld [vmem:[#allocation9 + $0x100] sm:$0xff]
        %v1121 = vld [vmem:[#allocation9 + $0x108] sm:$0xff]
        %v1122 = vld [vmem:[#allocation9 + $0x110] sm:$0xff]
        %v1123 = vld [vmem:[#allocation9 + $0x118] sm:$0xff]
        %v1124 = vld [vmem:[#allocation9 + $0x120] sm:$0xff]
        %v1125 = vld [vmem:[#allocation9 + $0x128] sm:$0xff]
        %v1126 = vld [vmem:[#allocation9 + $0x130] sm:$0xff]
        %v1127 = vld [vmem:[#allocation9 + $0x138] sm:$0xff]
        %v1128 = vld [vmem:[#allocation9 + $0x140] sm:$0xff]
        %v1129 = vld [vmem:[#allocation9 + $0x148] sm:$0xff]
        %v1130 = vld [vmem:[#allocation9 + $0x150] sm:$0xff]
        %v1131 = vld [vmem:[#allocation9 + $0x158] sm:$0xff]
        %v1132 = vld [vmem:[#allocation9 + $0x160] sm:$0xff]
        %v1133 = vld [vmem:[#allocation9 + $0x168] sm:$0xff]
        %v1134 = vld [vmem:[#allocation9 + $0x170] sm:$0xff]
        %v1135 = vld [vmem:[#allocation9 + $0x178] sm:$0xff]
        %1136 = vmatprep.subr.mxu0 0.0
        %1137 = vmatpush1.msra.mxu0 %v1103
        %1138 = vmatprep.subr.mxu0 0.0
        %1139 = vmatpush1.msra.mxu0 %v1102
        %1140 = vmatprep.subr.mxu0 0.0
        %1141 = vmatpush1.msra.mxu0 %v1101
        %1142 = vmatprep.subr.mxu0 0.0
        %1143 = vmatpush1.msra.mxu0 %v1100
        %1144 = vmatprep.subr.mxu0 0.0
        %1145 = vmatpush1.msra.mxu0 %v1099
        %1146 = vmatprep.subr.mxu0 0.0
        %1147 = vmatpush1.msra.mxu0 %v1098
        %1148 = vmatprep.subr.mxu0 0.0
        %1149 = vmatpush1.msra.mxu0 %v1097
        %1150 = vmatprep.subr.mxu0 0.0
        %1151 = vmatpush1.msra.mxu0 %v1096
        %1152 = vmatprep.subr.mxu0 0.0
        %1153 = vmatpush1.msra.mxu0 %v1095
        %1154 = vmatprep.subr.mxu0 0.0
        %1155 = vmatpush1.msra.mxu0 %v1094
        %1156 = vmatprep.subr.mxu0 0.0
        %1157 = vmatpush1.msra.mxu0 %v1093
        %1158 = vmatprep.subr.mxu0 0.0
        %1159 = vmatpush1.msra.mxu0 %v1092
        %1160 = vmatprep.subr.mxu0 0.0
        %1161 = vmatpush1.msra.mxu0 %v1091
        %1162 = vmatprep.subr.mxu0 0.0
        %1163 = vmatpush1.msra.mxu0 %v1090
        %1164 = vmatprep.subr.mxu0 0.0
        %1165 = vmatpush1.msra.mxu0 %v1089
        %1166 = vmatprep.subr.mxu0 0.0
        %1167 = vmatpush1.msra.mxu0 %v1088
        %1168 = vmatprep.subr.mxu0 0.0
        %1169 = vmatpush2.msra.mxu0 %v1119
        %1170 = vmatprep.subr.mxu0 0.0
        %1171 = vmatpush2.msra.mxu0 %v1118
        %1172 = vmatprep.subr.mxu0 0.0
        %1173 = vmatpush2.msra.mxu0 %v1117
        %1174 = vmatprep.subr.mxu0 0.0
        %1175 = vmatpush2.msra.mxu0 %v1116
        %1176 = vmatprep.subr.mxu0 0.0
        %1177 = vmatpush2.msra.mxu0 %v1115
        %1178 = vmatprep.subr.mxu0 0.0
        %1179 = vmatpush2.msra.mxu0 %v1114
        %1180 = vmatprep.subr.mxu0 0.0
        %1181 = vmatpush2.msra.mxu0 %v1113
        %1182 = vmatprep.subr.mxu0 0.0
        %1183 = vmatpush2.msra.mxu0 %v1112
        %1184 = vmatprep.subr.mxu0 0.0
        %1185 = vmatpush2.msra.mxu0 %v1111
        %1186 = vmatprep.subr.mxu0 0.0
        %1187 = vmatpush2.msra.mxu0 %v1110
        %1188 = vmatprep.subr.mxu0 0.0
        %1189 = vmatpush2.msra.mxu0 %v1109
        %1190 = vmatprep.subr.mxu0 0.0
        %1191 = vmatpush2.msra.mxu0 %v1108
        %1192 = vmatprep.subr.mxu0 0.0
        %1193 = vmatpush2.msra.mxu0 %v1107
        %1194 = vmatprep.subr.mxu0 0.0
        %1195 = vmatpush2.msra.mxu0 %v1106
        %1196 = vmatprep.subr.mxu0 0.0
        %1197 = vmatpush2.msra.mxu0 %v1105
        %1198 = vmatprep.subr.mxu0 0.0
        %1199 = vmatpush2.msra.mxu0 %v1104
        %1200 = vmatprep.mubr.f32.mxu0 %v1080
        %1201 = vmatmul.mubr.f32.gmra.mxu0 %v1084
        %v1202 = vpop.f32.mrf.mxu0
        %v1203 = vadd.f32 0.0, %v1202
        %v1204 = vpop.f32.mrf.mxu0
        %1205 = vmatprep.mubr.f32.mxu0 %v1081
        %1206 = vmatmul.mubr.f32.gmra.mxu0 %v1085
        %v1207 = vpop.f32.mrf.mxu0
        %v1208 = vadd.f32 0.0, %v1207
        %v1209 = vpop.f32.mrf.mxu0
        %1210 = vdwg.mxu0
        %1211 = vmatprep.subr.mxu0 0.0
        %1212 = vmatpush1.msra.mxu0 %v1135
        %1213 = vmatprep.subr.mxu0 0.0
        %1214 = vmatpush1.msra.mxu0 %v1134
        %1215 = vmatprep.subr.mxu0 0.0
        %1216 = vmatpush1.msra.mxu0 %v1133
        %1217 = vmatprep.subr.mxu0 0.0
        %1218 = vmatpush1.msra.mxu0 %v1132
        %1219 = vmatprep.subr.mxu0 0.0
        %1220 = vmatpush1.msra.mxu0 %v1131
        %1221 = vmatprep.subr.mxu0 0.0
        %1222 = vmatpush1.msra.mxu0 %v1130
        %1223 = vmatprep.subr.mxu0 0.0
        %1224 = vmatpush1.msra.mxu0 %v1129
        %1225 = vmatprep.subr.mxu0 0.0
        %1226 = vmatpush1.msra.mxu0 %v1128
        %1227 = vmatprep.subr.mxu0 0.0
        %1228 = vmatpush1.msra.mxu0 %v1127
        %1229 = vmatprep.subr.mxu0 0.0
        %1230 = vmatpush1.msra.mxu0 %v1126
        %1231 = vmatprep.subr.mxu0 0.0
        %1232 = vmatpush1.msra.mxu0 %v1125
        %1233 = vmatprep.subr.mxu0 0.0
        %1234 = vmatpush1.msra.mxu0 %v1124
        %1235 = vmatprep.subr.mxu0 0.0
        %1236 = vmatpush1.msra.mxu0 %v1123
        %1237 = vmatprep.subr.mxu0 0.0
        %1238 = vmatpush1.msra.mxu0 %v1122
        %1239 = vmatprep.subr.mxu0 0.0
        %1240 = vmatpush1.msra.mxu0 %v1121
        %1241 = vmatprep.subr.mxu0 0.0
        %1242 = vmatpush1.msra.mxu0 %v1120
        %1243 = vmatprep.subr.mxu0 0.0
        %1244 = vmatpush2.msra.mxu0 0.0
        %1245 = vmatprep.subr.mxu0 0.0
        %1246 = vmatpush2.msra.mxu0 0.0
        %1247 = vmatprep.subr.mxu0 0.0
        %1248 = vmatpush2.msra.mxu0 0.0
        %1249 = vmatprep.subr.mxu0 0.0
        %1250 = vmatpush2.msra.mxu0 0.0
        %1251 = vmatprep.subr.mxu0 0.0
        %1252 = vmatpush2.msra.mxu0 0.0
        %1253 = vmatprep.subr.mxu0 0.0
        %1254 = vmatpush2.msra.mxu0 0.0
        %1255 = vmatprep.subr.mxu0 0.0
        %1256 = vmatpush2.msra.mxu0 0.0
        %1257 = vmatprep.subr.mxu0 0.0
        %1258 = vmatpush2.msra.mxu0 0.0
        %1259 = vmatprep.subr.mxu0 0.0
        %1260 = vmatpush2.msra.mxu0 0.0
        %1261 = vmatprep.subr.mxu0 0.0
        %1262 = vmatpush2.msra.mxu0 0.0
        %1263 = vmatprep.subr.mxu0 0.0
        %1264 = vmatpush2.msra.mxu0 0.0
        %1265 = vmatprep.subr.mxu0 0.0
        %1266 = vmatpush2.msra.mxu0 0.0
        %1267 = vmatprep.subr.mxu0 0.0
        %1268 = vmatpush2.msra.mxu0 0.0
        %1269 = vmatprep.subr.mxu0 0.0
        %1270 = vmatpush2.msra.mxu0 0.0
        %1271 = vmatprep.subr.mxu0 0.0
        %1272 = vmatpush2.msra.mxu0 0.0
        %1273 = vmatprep.subr.mxu0 0.0
        %1274 = vmatpush2.msra.mxu0 0.0
        %1275 = vmatprep.mubr.f32.mxu0 0.0
        %1276 = vmatmul.mubr.f32.gmra.mxu0 %v1086
        %v1277 = vpop.f32.mrf.mxu0
        %v1278 = vadd.f32 %v1203, %v1277
        %v1279 = vpop.f32.mrf.mxu0
        %1280 = vmatprep.mubr.f32.mxu0 0.0
        %1281 = vmatmul.mubr.f32.gmra.mxu0 %v1087
        %v1282 = vpop.f32.mrf.mxu0
        %v1283 = vadd.f32 %v1208, %v1282
        %v1284 = vpop.f32.mrf.mxu0
        %1285 = vdwg.mxu0
        %v1286 = vadd.f32 %v506, %v507
        %v1287 = vrot.slane %v1286, 4
        %v1288 = vadd.f32 %v1286, %v1287
        %v1289 = vrot.slane %v1288, 2
        %v1290 = vadd.f32 %v1288, %v1289
        %v1291 = vrot.slane %v1290, 1
        %v1292 = vadd.f32 %v1290, %v1291
        %v1293 = vld [vmem:[%s7] sm:$0xff]
        %v1294 = vld [vmem:[%s7 + $0x8] sm:$0xff]
        %v1295 = vld [vmem:[%s7 + $0x10] sm:$0xff]
        %v1296 = vld [vmem:[%s7 + $0x18] sm:$0xff]
        %v1297 = vld [vmem:[%s7 + $0x20] sm:$0xff]
        %v1298 = vld [vmem:[%s7 + $0x28] sm:$0xff]
        %v1299 = vld [vmem:[%s7 + $0x30] sm:$0xff]
        %v1300 = vld [vmem:[%s7 + $0x38] sm:$0xff]
        %v1301 = vld [vmem:[%s7 + $0x40] sm:$0xff]
        %v1302 = vld [vmem:[%s7 + $0x48] sm:$0xff]
        %v1303 = vld [vmem:[%s7 + $0x50] sm:$0xff]
        %v1304 = vld [vmem:[%s7 + $0x58] sm:$0xff]
        %v1305 = vld [vmem:[%s7 + $0x60] sm:$0xff]
        %v1306 = vld [vmem:[%s7 + $0x68] sm:$0xff]
        %v1307 = vld [vmem:[%s7 + $0x70] sm:$0xff]
        %v1308 = vld [vmem:[%s7 + $0x78] sm:$0xff]
        %1309 = vmatprep.subr.mxu0 0.0
        %1310 = vmatpush1.msra.mxu0 %v1308
        %1311 = vmatprep.subr.mxu0 0.0
        %1312 = vmatpush1.msra.mxu0 %v1307
        %1313 = vmatprep.subr.mxu0 0.0
        %1314 = vmatpush1.msra.mxu0 %v1306
        %1315 = vmatprep.subr.mxu0 0.0
        %1316 = vmatpush1.msra.mxu0 %v1305
        %1317 = vmatprep.subr.mxu0 0.0
        %1318 = vmatpush1.msra.mxu0 %v1304
        %1319 = vmatprep.subr.mxu0 0.0
        %1320 = vmatpush1.msra.mxu0 %v1303
        %1321 = vmatprep.subr.mxu0 0.0
        %1322 = vmatpush1.msra.mxu0 %v1302
        %1323 = vmatprep.subr.mxu0 0.0
        %1324 = vmatpush1.msra.mxu0 %v1301
        %1325 = vmatprep.subr.mxu0 0.0
        %1326 = vmatpush1.msra.mxu0 %v1300
        %1327 = vmatprep.subr.mxu0 0.0
        %1328 = vmatpush1.msra.mxu0 %v1299
        %1329 = vmatprep.subr.mxu0 0.0
        %1330 = vmatpush1.msra.mxu0 %v1298
        %1331 = vmatprep.subr.mxu0 0.0
        %1332 = vmatpush1.msra.mxu0 %v1297
        %1333 = vmatprep.subr.mxu0 0.0
        %1334 = vmatpush1.msra.mxu0 %v1296
        %1335 = vmatprep.subr.mxu0 0.0
        %1336 = vmatpush1.msra.mxu0 %v1295
        %1337 = vmatprep.subr.mxu0 0.0
        %1338 = vmatpush1.msra.mxu0 %v1294
        %1339 = vmatprep.subr.mxu0 0.0
        %1340 = vmatpush1.msra.mxu0 %v1293
        %1341 = vmatprep.subr.mxu0 0.0
        %1342 = vmatpush2.msra.mxu0 0.0
        %1343 = vmatprep.subr.mxu0 0.0
        %1344 = vmatpush2.msra.mxu0 0.0
        %1345 = vmatprep.subr.mxu0 0.0
        %1346 = vmatpush2.msra.mxu0 0.0
        %1347 = vmatprep.subr.mxu0 0.0
        %1348 = vmatpush2.msra.mxu0 0.0
        %1349 = vmatprep.subr.mxu0 0.0
        %1350 = vmatpush2.msra.mxu0 0.0
        %1351 = vmatprep.subr.mxu0 0.0
        %1352 = vmatpush2.msra.mxu0 0.0
        %1353 = vmatprep.subr.mxu0 0.0
        %1354 = vmatpush2.msra.mxu0 0.0
        %1355 = vmatprep.subr.mxu0 0.0
        %1356 = vmatpush2.msra.mxu0 0.0
        %1357 = vmatprep.subr.mxu0 0.0
        %1358 = vmatpush2.msra.mxu0 0.0
        %1359 = vmatprep.subr.mxu0 0.0
        %1360 = vmatpush2.msra.mxu0 0.0
        %1361 = vmatprep.subr.mxu0 0.0
        %1362 = vmatpush2.msra.mxu0 0.0
        %1363 = vmatprep.subr.mxu0 0.0
        %1364 = vmatpush2.msra.mxu0 0.0
        %1365 = vmatprep.subr.mxu0 0.0
        %1366 = vmatpush2.msra.mxu0 0.0
        %1367 = vmatprep.subr.mxu0 0.0
        %1368 = vmatpush2.msra.mxu0 0.0
        %1369 = vmatprep.subr.mxu0 0.0
        %1370 = vmatpush2.msra.mxu0 0.0
        %1371 = vmatprep.subr.mxu0 0.0
        %1372 = vmatpush2.msra.mxu0 0.0
        %1373 = vmatprep.mubr.f32.mxu0 0.0
        %1374 = vmatmul.mubr.f32.gmra.mxu0 %v1292
        %v1375 = vpop.f32.mrf.mxu0
        %v1376 = vadd.f32 0.0, %v1375
        %v1377 = vpop.f32.mrf.mxu0
        %1378 = vdwg.mxu0
        %v1379 = vmax.f32 %v1376, 0.0
        %v1380 = vld [vmem:[%s8] sm:$0x3]
        %vm1381 = vcmask 15360
        %v1383 = vsel %vm1381, %v1379, 0
        %vm1385 = vcmask 1041408
        %v1387 = vsel %vm1385, %v1380, 0
        %1389 = vmatprep.subr.mxu0 0.0
        %1390 = vmatpush1.msra.mxu0 0.0
        %1391 = vmatprep.subr.mxu0 0.0
        %1392 = vmatpush1.msra.mxu0 0.0
        %1393 = vmatprep.subr.mxu0 0.0
        %1394 = vmatpush1.msra.mxu0 0.0
        %1395 = vmatprep.subr.mxu0 0.0
        %1396 = vmatpush1.msra.mxu0 0.0
        %1397 = vmatprep.subr.mxu0 0.0
        %1398 = vmatpush1.msra.mxu0 0.0
        %1399 = vmatprep.subr.mxu0 0.0
        %1400 = vmatpush1.msra.mxu0 0.0
        %1401 = vmatprep.subr.mxu0 0.0
        %1402 = vmatpush1.msra.mxu0 0.0
        %1403 = vmatprep.subr.mxu0 0.0
        %1404 = vmatpush1.msra.mxu0 0.0
        %1405 = vmatprep.subr.mxu0 0.0
        %1406 = vmatpush1.msra.mxu0 0.0
        %1407 = vmatprep.subr.mxu0 0.0
        %1408 = vmatpush1.msra.mxu0 0.0
        %1409 = vmatprep.subr.mxu0 0.0
        %1410 = vmatpush1.msra.mxu0 0.0
        %1411 = vmatprep.subr.mxu0 0.0
        %1412 = vmatpush1.msra.mxu0 0.0
        %1413 = vmatprep.subr.mxu0 0.0
        %1414 = vmatpush1.msra.mxu0 0.0
        %1415 = vmatprep.subr.mxu0 0.0
        %1416 = vmatpush1.msra.mxu0 0.0
        %1417 = vmatprep.subr.mxu0 0.0
        %1418 = vmatpush1.msra.mxu0 0.0
        %1419 = vmatprep.subr.mxu0 0.0
        %1420 = vmatpush1.msra.mxu0 %v1387
        %1421 = vmatprep.subr.mxu0 0.0
        %1422 = vmatpush2.msra.mxu0 0.0
        %1423 = vmatprep.subr.mxu0 0.0
        %1424 = vmatpush2.msra.mxu0 0.0
        %1425 = vmatprep.subr.mxu0 0.0
        %1426 = vmatpush2.msra.mxu0 0.0
        %1427 = vmatprep.subr.mxu0 0.0
        %1428 = vmatpush2.msra.mxu0 0.0
        %1429 = vmatprep.subr.mxu0 0.0
        %1430 = vmatpush2.msra.mxu0 0.0
        %1431 = vmatprep.subr.mxu0 0.0
        %1432 = vmatpush2.msra.mxu0 0.0
        %1433 = vmatprep.subr.mxu0 0.0
        %1434 = vmatpush2.msra.mxu0 0.0
        %1435 = vmatprep.subr.mxu0 0.0
        %1436 = vmatpush2.msra.mxu0 0.0
        %1437 = vmatprep.subr.mxu0 0.0
        %1438 = vmatpush2.msra.mxu0 0.0
        %1439 = vmatprep.subr.mxu0 0.0
        %1440 = vmatpush2.msra.mxu0 0.0
        %1441 = vmatprep.subr.mxu0 0.0
        %1442 = vmatpush2.msra.mxu0 0.0
        %1443 = vmatprep.subr.mxu0 0.0
        %1444 = vmatpush2.msra.mxu0 0.0
        %1445 = vmatprep.subr.mxu0 0.0
        %1446 = vmatpush2.msra.mxu0 0.0
        %1447 = vmatprep.subr.mxu0 0.0
        %1448 = vmatpush2.msra.mxu0 0.0
        %1449 = vmatprep.subr.mxu0 0.0
        %1450 = vmatpush2.msra.mxu0 0.0
        %1451 = vmatprep.subr.mxu0 0.0
        %1452 = vmatpush2.msra.mxu0 0.0
        %1453 = vmatprep.mubr.f32.mxu0 0.0
        %1454 = vmatmul.mubr.f32.gmra.mxu0 %v1383
        %v1455 = vpop.f32.mrf.mxu0
        %v1456 = vadd.f32 0.0, %v1455
        %v1457 = vpop.f32.mrf.mxu0
        %1458 = vdwg.mxu0
        %v1459 = vrcp.pop 30.0
        %v1460 = vmul.f32 %v1456, %v1459
        %vm1461 = vcmask 8192
        %v1462 = vsel %vm1461, %v1460, -inf
        %1463 = vmax.xlane.f32.xlu0 %v1462
        %v1464 = vpop.xlane.xlu0 %1463
        %v1465 = vsub.f32 %v1460, %v1464
        %v1466 = vmul.f32 %v1465, 1.442695
        %v1467 = vpow.pop %v1466
        %v1468 = vsel %vm1461, %v1467, 0.0
        %1469 = vadd.xlane.f32.xlu0 %v1468
        %v1470 = vpop.xlane.xlu0 %1469
        %v1471 = vrcp.pop %v1470
        %v1472 = vmul.f32 %v1467, %v1471
        %s1474 = vtos %v1472
        %v1475 = vstv %s1474
        %v1477 = vmul.f32 %v1278, %v1475
        %v1478 = vmul.f32 %v1283, %v1475
        %1479 = vrot.lane.b32.xlu0 %v1472, 127
        %v1480 = vpop.permute.xlu0 %1479
        %s1481 = vtos %v1480
        %v1482 = vstv %s1481
        %v1484 = vmul.f32 %v956, %v1482
        %v1485 = vmul.f32 %v961, %v1482
        %v1486 = vadd.f32 %v1477, %v1484
        %v1487 = vadd.f32 %v1478, %v1485
        %vm1488 = vcmp.ge.f32.partialorder %v1486, 0.0
        %vm1489 = vcmp.ge.f32.partialorder %v1487, 0.0
        %v1490 = vmul.f32 %v1486, 0.2
        %v1491 = vmul.f32 %v1487, 0.2
        %v1492 = vsel %vm1488, %v1486, %v1490
        %v1493 = vsel %vm1489, %v1487, %v1491
        %v1494 = vld [vmem:[#allocation6] sm:$0xff]
        %v1495 = vld [vmem:[#allocation6 + $0x8] sm:$0xff]
        %v1496 = vld [vmem:[#allocation6 + $0x10] sm:$0xff]
        %v1497 = vld [vmem:[#allocation6 + $0x18] sm:$0xff]
        %v1498 = vld [vmem:[#allocation6 + $0x20] sm:$0xff]
        %v1499 = vld [vmem:[#allocation6 + $0x28] sm:$0xff]
        %v1500 = vld [vmem:[#allocation6 + $0x30] sm:$0xff]
        %v1501 = vld [vmem:[#allocation6 + $0x38] sm:$0xff]
        %v1502 = vld [vmem:[#allocation6 + $0x40] sm:$0xff]
        %v1503 = vld [vmem:[#allocation6 + $0x48] sm:$0xff]
        %v1504 = vld [vmem:[#allocation6 + $0x50] sm:$0xff]
        %v1505 = vld [vmem:[#allocation6 + $0x58] sm:$0xff]
        %v1506 = vld [vmem:[#allocation6 + $0x60] sm:$0xff]
        %v1507 = vld [vmem:[#allocation6 + $0x68] sm:$0xff]
        %v1508 = vld [vmem:[#allocation6 + $0x70] sm:$0xff]
        %v1509 = vld [vmem:[#allocation6 + $0x78] sm:$0xff]
        %1510 = vmatprep.subr.mxu0 0.0
        %1511 = vmatpush1.msra.mxu0 %v1509
        %1512 = vmatprep.subr.mxu0 0.0
        %1513 = vmatpush1.msra.mxu0 %v1508
        %1514 = vmatprep.subr.mxu0 0.0
        %1515 = vmatpush1.msra.mxu0 %v1507
        %1516 = vmatprep.subr.mxu0 0.0
        %1517 = vmatpush1.msra.mxu0 %v1506
        %1518 = vmatprep.subr.mxu0 0.0
        %1519 = vmatpush1.msra.mxu0 %v1505
        %1520 = vmatprep.subr.mxu0 0.0
        %1521 = vmatpush1.msra.mxu0 %v1504
        %1522 = vmatprep.subr.mxu0 0.0
        %1523 = vmatpush1.msra.mxu0 %v1503
        %1524 = vmatprep.subr.mxu0 0.0
        %1525 = vmatpush1.msra.mxu0 %v1502
        %1526 = vmatprep.subr.mxu0 0.0
        %1527 = vmatpush1.msra.mxu0 %v1501
        %1528 = vmatprep.subr.mxu0 0.0
        %1529 = vmatpush1.msra.mxu0 %v1500
        %1530 = vmatprep.subr.mxu0 0.0
        %1531 = vmatpush1.msra.mxu0 %v1499
        %1532 = vmatprep.subr.mxu0 0.0
        %1533 = vmatpush1.msra.mxu0 %v1498
        %1534 = vmatprep.subr.mxu0 0.0
        %1535 = vmatpush1.msra.mxu0 %v1497
        %1536 = vmatprep.subr.mxu0 0.0
        %1537 = vmatpush1.msra.mxu0 %v1496
        %1538 = vmatprep.subr.mxu0 0.0
        %1539 = vmatpush1.msra.mxu0 %v1495
        %1540 = vmatprep.subr.mxu0 0.0
        %1541 = vmatpush1.msra.mxu0 %v1494
        %1542 = vmatprep.subr.mxu0 0.0
        %1543 = vmatpush2.msra.mxu0 0.0
        %1544 = vmatprep.subr.mxu0 0.0
        %1545 = vmatpush2.msra.mxu0 0.0
        %1546 = vmatprep.subr.mxu0 0.0
        %1547 = vmatpush2.msra.mxu0 0.0
        %1548 = vmatprep.subr.mxu0 0.0
        %1549 = vmatpush2.msra.mxu0 0.0
        %1550 = vmatprep.subr.mxu0 0.0
        %1551 = vmatpush2.msra.mxu0 0.0
        %1552 = vmatprep.subr.mxu0 0.0
        %1553 = vmatpush2.msra.mxu0 0.0
        %1554 = vmatprep.subr.mxu0 0.0
        %1555 = vmatpush2.msra.mxu0 0.0
        %1556 = vmatprep.subr.mxu0 0.0
        %1557 = vmatpush2.msra.mxu0 0.0
        %1558 = vmatprep.subr.mxu0 0.0
        %1559 = vmatpush2.msra.mxu0 0.0
        %1560 = vmatprep.subr.mxu0 0.0
        %1561 = vmatpush2.msra.mxu0 0.0
        %1562 = vmatprep.subr.mxu0 0.0
        %1563 = vmatpush2.msra.mxu0 0.0
        %1564 = vmatprep.subr.mxu0 0.0
        %1565 = vmatpush2.msra.mxu0 0.0
        %1566 = vmatprep.subr.mxu0 0.0
        %1567 = vmatpush2.msra.mxu0 0.0
        %1568 = vmatprep.subr.mxu0 0.0
        %1569 = vmatpush2.msra.mxu0 0.0
        %1570 = vmatprep.subr.mxu0 0.0
        %1571 = vmatpush2.msra.mxu0 0.0
        %1572 = vmatprep.subr.mxu0 0.0
        %1573 = vmatpush2.msra.mxu0 0.0
        %1574 = vmatprep.mubr.f32.mxu0 0.0
        %1575 = vmatmul.mubr.f32.gmra.mxu0 %v1492
        %v1576 = vpop.f32.mrf.mxu0
        %v1577 = vadd.f32 %v409, %v1576
        %v1578 = vpop.f32.mrf.mxu0
        %1579 = vmatprep.mubr.f32.mxu0 0.0
        %1580 = vmatmul.mubr.f32.gmra.mxu0 %v1493
        %v1581 = vpop.f32.mrf.mxu0
        %v1582 = vadd.f32 %v410, %v1581
        %v1583 = vpop.f32.mrf.mxu0
        %1584 = vdwg.mxu0
        %1585 = vst [vmem:[%s408] sm:$0xff] %v1577
        %1586 = vst [vmem:[%s408 + $0x8] sm:$0xff] %v1582
        %s1587 = sand.u32 %s230, 1
        %s1588 = scalar_lea.sflag [#allocation5], %s1587
        %s1589 = sand.u32 %s230, 1
        %s1590 = smul.addr %s1589, 16
        %s1591 = scalar_lea.vmem [#allocation12], %s1590
        // Predicated region
        $region77: #{tpu_custom_call.1} parent=55 // pred_check
          %p1592 = pneg %p240
        $region78: #{tpu_custom_call.1} parent=55 // pred_check_branch
          %1594 = sbr.rel (%p1592) target = $region80
        $region79: #{tpu_custom_call.1} parent=55 // pred_region
          %s1596 = ssub.s32 256, 256
          %1597 = vsyncadd %s1588, %s1596
          %s1598 = smul.addr %s28, 2
          %s1599 = smul.addr %s1598, 128
          %s1600 = scalar_lea.hbm %s9, %s1599
          %s1601 = sshll.u32 %s1591, 4
          %s1602 = int_to_ptr.vmem [resolvable:$true] %s1601
          %1607 = dma.vmem_to_hbm [thread:$0]  %s1602, 256, %s1600, %s1588, 128, 128, 8
        $region80: #{tpu_custom_call.1} parent=55 // pred_fallthru
          _
      $region56: #{tpu_custom_call.1} parent=5 // pred_fallthru
        _
      %p1608 = scmp.le.s32.totalorder 2, %s23
      // Predicated region
      $region81: #{tpu_custom_call.1} parent=5 // pred_check
        %p1609 = pneg %p1608
      $region82: #{tpu_custom_call.1} parent=5 // pred_check_branch
        %1611 = sbr.rel (%p1609) target = $region84
      $region83: #{tpu_custom_call.1} parent=5 // pred_region
        %s1612 = ssub.s32 %s23, 2
        // Predicated region
        $region85: #{tpu_custom_call.1} parent=83 // pred_check
          %p1613 = pneg %p246
        $region86: #{tpu_custom_call.1} parent=83 // pred_check_branch
          %1615 = sbr.rel (%p1613) target = $region88
        $region87: #{tpu_custom_call.1} parent=83 // pred_region
          %s1616 = sand.u32 %s231, 1
          %s1617 = scalar_lea.sflag [#allocation5], %s1616
          %s1618 = sand.u32 %s231, 1
          %s1619 = smul.addr %s1618, 16
          %s1620 = scalar_lea.vmem [#allocation12], %s1619
          %1621 = dma.done %s1617, 256
        $region88: #{tpu_custom_call.1} parent=83 // pred_fallthru
          _
      $region84: #{tpu_custom_call.1} parent=5 // pred_fallthru
        _
    $region6: #{tpu_custom_call.1} parent=1 // loop_footer
      %s27 = sadd.s32 1, %s23
    $region7: #{tpu_custom_call.1} parent=1 // loop_footer_branch
      %22 = sbr.rel target = $region3
    $region8: #{tpu_custom_call.1} parent=1 // loop_exit
      _
    %1622 = vsyncpa [#allocation4], 1
    %s1623 = scalar_lea.sflag [#allocation4], 1
    %1624 = vsyncpa %s1623, 1
    %1625 = vsyncpa [#allocation7], 1
    %1626 = vsyncpa [#allocation10], 1
    %1627 = vsyncpa [#allocation5], 1
    %s1628 = scalar_lea.sflag [#allocation5], 1
    %1629 = vsyncpa %s1628, 1

</llo_original>
